<compile_context>
chip_gen: v7x
topology: tpu7x:2x2x1
jax: 0.10.0
libtpu: 0.0.40
codegen_flags: <defaults>
</compile_context>

<pallas_src>
import functools

import numpy as np
import jax
import jax.numpy as jnp
from jax.experimental import pallas as pl
from jax.experimental.pallas import tpu as pltpu


# ----------------------------------------------------------------------------
# Pallas kernels
# ----------------------------------------------------------------------------
def _pointwise_kernel(x_ref, w_ref, b_ref, o_ref, *, relu):
    """o = relu?(w @ x + b).  x:(1,Cin,LT) bf16, w:(N,Cin) bf16, b:(N,1) f32."""
    acc = jnp.dot(w_ref[...], x_ref[0], preferred_element_type=jnp.float32)
    acc = acc + b_ref[...]
    if relu:
        acc = jnp.maximum(acc, 0.0)
    o_ref[0] = acc.astype(o_ref.dtype)


def _conv1xk_kernel(x_ref, w_ref, b_ref, o_ref, *, k, lout, relu):
    """1-D conv along the (pre reflect-padded, flattened) lane axis.

    x:(1,C,Lin) bf16 with Lin = lout + k - 1,  w:(k,Cout,C) bf16 (tap-major),
    b:(Cout,1) f32,  o:(1,Cout,lout) f32.
    The k taps are accumulated from shifted lane windows of the VMEM slab, so
    no k-times-larger im2col patch matrix ever touches HBM.
    """
    acc = jnp.dot(w_ref[0], x_ref[0, :, pl.ds(0, lout)],
                  preferred_element_type=jnp.float32)
    for j in range(1, k):                       # static, fully unrolled
        acc += jnp.dot(w_ref[j], x_ref[0, :, pl.ds(j, lout)],
                       preferred_element_type=jnp.float32)
    acc = acc + b_ref[...]
    if relu:
        acc = jnp.maximum(acc, 0.0)
    o_ref[0] = acc.astype(o_ref.dtype)


# ----------------------------------------------------------------------------
# Pallas wrappers
# ----------------------------------------------------------------------------
def _round_up(x, m):
    return (x + m - 1) // m * m


_LANE_TILE_MAX = 4096   # keep the whole spatial axis in one block up to this


def pointwise_conv(x_flat, w, b, relu=True):
    """relu?(w @ x[b] + b) per batch item.

    x_flat:(B,Cin,L), w:(N,Cin), b:(N,).  Returns (B,N,L) float32.
    K = Cin is a single full-dim block (no padding to 128); L sits on lanes.
    """
    B, Cin, L = x_flat.shape
    N = w.shape[0]
    if L <= _LANE_TILE_MAX:
        lt, Lp, xp = L, L, x_flat
    else:
        lt = _LANE_TILE_MAX
        Lp = _round_up(L, lt)
        xp = jnp.pad(x_flat, ((0, 0), (0, 0), (0, Lp - L)))

    out = pl.pallas_call(
        functools.partial(_pointwise_kernel, relu=relu),
        out_shape=jax.ShapeDtypeStruct((B, N, Lp), jnp.float32),
        grid=(B, Lp // lt),
        in_specs=[
            pl.BlockSpec((1, Cin, lt), lambda bb, ll: (bb, 0, ll)),
            pl.BlockSpec((N, Cin), lambda bb, ll: (0, 0)),
            pl.BlockSpec((N, 1), lambda bb, ll: (0, 0)),
        ],
        out_specs=pl.BlockSpec((1, N, lt), lambda bb, ll: (bb, 0, ll)),
        compiler_params=pltpu.CompilerParams(
            dimension_semantics=("parallel", "parallel")),
    )(xp.astype(jnp.bfloat16), w.astype(jnp.bfloat16),
      b.reshape(N, 1).astype(jnp.float32))
    return out if Lp == L else out[:, :, :L]


def conv_1xk(x, w_taps, b, relu=True):
    """Conv2d kernel (1,k), stride 1, reflect padding (0, k//2), fused bias+ReLU.

    x:(B,C,H,W), w_taps:(k,Cout,C) tap-major packed weight, b:(Cout,).
    Returns (B,Cout,H,W) float32.
    """
    B, C, H, W = x.shape
    k, Cout, _ = w_taps.shape
    pad = k // 2
    Wp = W + 2 * pad
    xp = jnp.pad(x, ((0, 0), (0, 0), (0, 0), (pad, pad)), mode="reflect")
    lout = H * Wp                       # one output per padded position
    lin = lout + (k - 1)                # tail zeros so tap reads stay in bounds
    xf = jnp.pad(xp.reshape(B, C, lout), ((0, 0), (0, 0), (0, k - 1)))

    # TODO(synk): tile the flattened spatial axis (with a k-1 halo) if C*H*Wp
    # ever exceeds the VMEM block budget; not needed at these sizes.
    out = pl.pallas_call(
        functools.partial(_conv1xk_kernel, k=k, lout=lout, relu=relu),
        out_shape=jax.ShapeDtypeStruct((B, Cout, lout), jnp.float32),
        grid=(B,),
        in_specs=[
            pl.BlockSpec((1, C, lin), lambda bb: (bb, 0, 0)),
            pl.BlockSpec((k, Cout, C), lambda bb: (0, 0, 0)),
            pl.BlockSpec((Cout, 1), lambda bb: (0, 0)),
        ],
        out_specs=pl.BlockSpec((1, Cout, lout), lambda bb: (bb, 0, 0)),
        compiler_params=pltpu.CompilerParams(
            dimension_semantics=("parallel",)),
    )(xf.astype(jnp.bfloat16), w_taps.astype(jnp.bfloat16),
      b.reshape(Cout, 1).astype(jnp.float32))

    # Columns w >= W of each H-row are cross-row garbage; drop them.
    return out.reshape(B, Cout, H, Wp)[:, :, :, :W]


def maxpool_3x1(x):
    """MaxPool2d(kernel_size=(3,1), stride=(1,1)), valid:  (B,C,H,W)->(B,C,H-2,W)."""
    return jnp.maximum(jnp.maximum(x[:, :, :-2, :], x[:, :, 1:-1, :]),
                       x[:, :, 2:, :])


# ----------------------------------------------------------------------------
# Inception forward (packed parameters)
# ----------------------------------------------------------------------------
def inception_forward(p, x):
    """x:(B,Cin,H,W) -> (B, 4*Cout, H, W)."""
    B, Cin, H, W = x.shape
    cout = p["w_4"].shape[0]
    L = H * W

    # block1 / block2[0] / block3[0]: one fused 1x1 GEMM over x.
    fused = pointwise_conv(x.reshape(B, Cin, L), p["w_111"], p["b_111"],
                           relu=True)                          # (B, 3*Cout, L)
    x1 = fused[:, 0 * cout:1 * cout].reshape(B, cout, H, W)
    h2 = fused[:, 1 * cout:2 * cout].reshape(B, cout, H, W)
    h3 = fused[:, 2 * cout:3 * cout].reshape(B, cout, H, W)

    # block2 tail: (1,3) reflect conv; block3 tail: (1,5) reflect conv.
    x2 = conv_1xk(h2, p["w_2b"], p["b_2b"], relu=True)
    x3 = conv_1xk(h3, p["w_3b"], p["b_3b"], relu=True)

    # block4: maxpool(3,1) -> reflect-pad H by 1 -> 1x1 conv + ReLU.
    h4 = jnp.pad(maxpool_3x1(x), ((0, 0), (0, 0), (1, 1), (0, 0)),
                 mode="reflect")
    x4 = pointwise_conv(h4.reshape(B, Cin, L), p["w_4"], p["b_4"],
                        relu=True).reshape(B, cout, H, W)

    return jnp.concatenate([x1, x2, x3, x4], axis=1)


# ----------------------------------------------------------------------------
# Parameter init (PyTorch OIHW layout) and one-time packing
# ----------------------------------------------------------------------------
def init_inception_params(key, in_channels, out_channels):
    def conv_init(k, co, ci, kh, kw):
        kw_, kb_ = jax.random.split(k)
        fan_in = ci * kh * kw
        bound = 1.0 / np.sqrt(fan_in)
        w = jax.random.uniform(kw_, (co, ci, kh, kw), jnp.float32, -bound, bound)
        b = jax.random.uniform(kb_, (co,), jnp.float32, -bound, bound)
        return w, b

    keys = jax.random.split(key, 6)
    ci, co = in_channels, out_channels
    return dict(
        b1=conv_init(keys[0], co, ci, 1, 1),
        b2a=conv_init(keys[1], co, ci, 1, 1),
        b2b=conv_init(keys[2], co, co, 1, 3),
        b3a=conv_init(keys[3], co, ci, 1, 1),
        b3b=conv_init(keys[4], co, co, 1, 5),
        b4=conv_init(keys[5], co, ci, 1, 1),
    )


def pack_inception_params(raw):
    """One-time packing: fuse the three same-input 1x1 weights along the output
    channel axis, pre-transpose (1,k) weights to tap-major (k,Cout,Cin), and
    pre-cast GEMM weights to bf16 (biases stay f32)."""
    (w1, b1), (w2a, b2a) = raw["b1"], raw["b2a"]
    (w2b, b2b), (w3a, b3a) = raw["b2b"], raw["b3a"]
    (w3b, b3b), (w4, b4) = raw["b3b"], raw["b4"]

    def pw(w):      # (Cout,Cin,1,1) -> (Cout,Cin)
        return w.reshape(w.shape[0], w.shape[1])

    def taps(w):    # (Cout,Cin,1,k) -> (k,Cout,Cin)
        return jnp.transpose(w[:, :, 0, :], (2, 0, 1))

    return dict(
        w_111=jnp.concatenate([pw(w1), pw(w2a), pw(w3a)],
                              axis=0).astype(jnp.bfloat16),
        b_111=jnp.concatenate([b1, b2a, b3a], axis=0),
        w_2b=taps(w2b).astype(jnp.bfloat16), b_2b=b2b,
        w_3b=taps(w3b).astype(jnp.bfloat16), b_3b=b3b,
        w_4=pw(w4).astype(jnp.bfloat16), b_4=b4,
    )


# ----------------------------------------------------------------------------
# Plain-XLA reference (for a sanity check only)
# ----------------------------------------------------------------------------
def _conv2d_ref(x, w, b):
    y = jax.lax.conv_general_dilated(
        x, w, window_strides=(1, 1), padding="VALID",
        dimension_numbers=("NCHW", "OIHW", "NCHW"))
    return y + b.reshape(1, -1, 1, 1)


def inception_reference(raw, x):
    relu = lambda t: jnp.maximum(t, 0.0)
    rp = lambda t, ph, pw: jnp.pad(
        t, ((0, 0), (0, 0), (ph, ph), (pw, pw)), mode="reflect")

    x1 = relu(_conv2d_ref(x, *raw["b1"]))
    h = relu(_conv2d_ref(x, *raw["b2a"]))
    x2 = relu(_conv2d_ref(rp(h, 0, 1), *raw["b2b"]))
    h = relu(_conv2d_ref(x, *raw["b3a"]))
    x3 = relu(_conv2d_ref(rp(h, 0, 2), *raw["b3b"]))
    pooled = jax.lax.reduce_window(
        x, -jnp.inf, jax.lax.max, (1, 1, 3, 1), (1, 1, 1, 1), "VALID")
    x4 = relu(_conv2d_ref(rp(pooled, 1, 0), *raw["b4"]))
    return jnp.concatenate([x1, x2, x3, x4], axis=1)


# ----------------------------------------------------------------------------
# Main
# ----------------------------------------------------------------------------
if __name__ == "__main__":
    key = jax.random.PRNGKey(0)
    k_param, k_x = jax.random.split(key)

    B, C_IN, H, W, C_OUT = 2, 4, 16, 16, 8
    raw = init_inception_params(k_param, C_IN, C_OUT)
    params = pack_inception_params(raw)           # packed once, outside jit
    x = jax.random.normal(k_x, (B, C_IN, H, W), jnp.float32)

    fwd = jax.jit(inception_forward)
    out = fwd(params, x)
    jax.block_until_ready(out)

    assert out.shape == (B, 4 * C_OUT, H, W), out.shape

    # Sanity check vs. plain XLA reference (loose tolerance: bf16 GEMM inputs).
    ref = inception_reference(raw, x)
    np.testing.assert_allclose(np.asarray(out), np.asarray(ref),
                               rtol=1e-1, atol=1e-1)

    print("KERNEL_OK")
</pallas_src>

<mosaic_0001>
module attributes {stable_mosaic.version = 11 : i64} {
  func.func @_pointwise_kernel(%arg0: i32, %arg1: i32, %arg2: memref<1x4x256xbf16, #tpu.memory_space<vmem>>, %arg3: memref<8x4xbf16, #tpu.memory_space<vmem>>, %arg4: memref<8x1xf32, #tpu.memory_space<vmem>>, %arg5: memref<1x8x256xf32, #tpu.memory_space<vmem>>) attributes {dimension_semantics = [#tpu.dimension_semantics<parallel>, #tpu.dimension_semantics<parallel>], iteration_bounds = array<i64: 2, 1>, scalar_prefetch = 0 : i64, scratch_operands = 0 : i64, tpu.core_type = #tpu.core_type<tc>, window_params = [{transform_indices = @transform_0, window_bounds = array<i64: 1, 4, 256>}, {pipeline_mode = #tpu.pipeline_mode<synchronous>, transform_indices = @transform_1, window_bounds = array<i64: 8, 4>}, {pipeline_mode = #tpu.pipeline_mode<synchronous>, transform_indices = @transform_2, window_bounds = array<i64: 8, 1>}, {transform_indices = @transform_3, window_bounds = array<i64: 1, 8, 256>}]} {
    %c0 = arith.constant 0 : index
    %c0_0 = arith.constant 0 : index
    %0 = vector.load %arg3[%c0, %c0_0] : memref<8x4xbf16, #tpu.memory_space<vmem>>, vector<8x4xbf16>
    %c0_1 = arith.constant 0 : index
    %c0_2 = arith.constant 0 : index
    %c0_3 = arith.constant 0 : index
    %1 = vector.load %arg2[%c0_1, %c0_2, %c0_3] : memref<1x4x256xbf16, #tpu.memory_space<vmem>>, vector<1x4x256xbf16>
    %2 = vector.shape_cast %1 : vector<1x4x256xbf16> to vector<4x256xbf16>
    %cst = arith.constant dense<0.000000e+00> : vector<8x256xf32>
    %3 = tpu.matmul %0, %2, %cst {dimension_numbers = #tpu.dot_dimension_numbers<[1], [0], [0], [1], [0, 0, 1, 1], [], []>} : vector<8x4xbf16>, vector<4x256xbf16>, vector<8x256xf32> -> vector<8x256xf32>
    %c0_4 = arith.constant 0 : index
    %c0_5 = arith.constant 0 : index
    %4 = vector.load %arg4[%c0_4, %c0_5] : memref<8x1xf32, #tpu.memory_space<vmem>>, vector<8x1xf32>
    %5 = vector.broadcast %4 : vector<8x1xf32> to vector<8x256xf32>
    %6 = arith.addf %3, %5 : vector<8x256xf32>
    %cst_6 = arith.constant 0.000000e+00 : f32
    %7 = vector.broadcast %cst_6 : f32 to vector<8x256xf32>
    %8 = arith.maximumf %6, %7 : vector<8x256xf32>
    %c0_7 = arith.constant 0 : index
    %c0_8 = arith.constant 0 : index
    %c0_9 = arith.constant 0 : index
    %9 = vector.load %arg5[%c0_7, %c0_8, %c0_9] : memref<1x8x256xf32, #tpu.memory_space<vmem>>, vector<1x8x256xf32>
    %10 = vector.shape_cast %9 : vector<1x8x256xf32> to vector<8x256xf32>
    %11 = vector.shape_cast %8 : vector<8x256xf32> to vector<1x8x256xf32>
    tpu.vector_store %arg5[%c0_7, %c0_8, %c0_9], %11 {strides = array<i32>} : memref<1x8x256xf32, #tpu.memory_space<vmem>>, vector<1x8x256xf32>,
    return
  }
  func.func @transform_0(%arg0: i32, %arg1: i32) -> (i32, i32, i32) {
    %c0_i32 = arith.constant 0 : i32
    %c0_i32_0 = arith.constant 0 : i32
    return %arg0, %c0_i32, %arg1 : i32, i32, i32
  }
  func.func @transform_1(%arg0: i32, %arg1: i32) -> (i32, i32) {
    %c0_i32 = arith.constant 0 : i32
    %c0_i32_0 = arith.constant 0 : i32
    %c0_i32_1 = arith.constant 0 : i32
    return %c0_i32, %c0_i32_0 : i32, i32
  }
  func.func @transform_2(%arg0: i32, %arg1: i32) -> (i32, i32) {
    %c0_i32 = arith.constant 0 : i32
    %c0_i32_0 = arith.constant 0 : i32
    %c0_i32_1 = arith.constant 0 : i32
    return %c0_i32, %c0_i32_0 : i32, i32
  }
  func.func @transform_3(%arg0: i32, %arg1: i32) -> (i32, i32, i32) {
    %c0_i32 = arith.constant 0 : i32
    %c0_i32_0 = arith.constant 0 : i32
    return %arg0, %c0_i32, %arg1 : i32, i32, i32
  }
}

module attributes {stable_mosaic.version = 11 : i64} {
  func.func @_pointwise_kernel(%arg0: i32, %arg1: i32, %arg2: memref<1x4x256xbf16, #tpu.memory_space<vmem>>, %arg3: memref<24x4xbf16, #tpu.memory_space<vmem>>, %arg4: memref<24x1xf32, #tpu.memory_space<vmem>>, %arg5: memref<1x24x256xf32, #tpu.memory_space<vmem>>) attributes {dimension_semantics = [#tpu.dimension_semantics<parallel>, #tpu.dimension_semantics<parallel>], iteration_bounds = array<i64: 2, 1>, scalar_prefetch = 0 : i64, scratch_operands = 0 : i64, tpu.core_type = #tpu.core_type<tc>, window_params = [{transform_indices = @transform_0, window_bounds = array<i64: 1, 4, 256>}, {pipeline_mode = #tpu.pipeline_mode<synchronous>, transform_indices = @transform_1, window_bounds = array<i64: 24, 4>}, {pipeline_mode = #tpu.pipeline_mode<synchronous>, transform_indices = @transform_2, window_bounds = array<i64: 24, 1>}, {transform_indices = @transform_3, window_bounds = array<i64: 1, 24, 256>}]} {
    %c0 = arith.constant 0 : index
    %c0_0 = arith.constant 0 : index
    %0 = vector.load %arg3[%c0, %c0_0] : memref<24x4xbf16, #tpu.memory_space<vmem>>, vector<24x4xbf16>
    %c0_1 = arith.constant 0 : index
    %c0_2 = arith.constant 0 : index
    %c0_3 = arith.constant 0 : index
    %1 = vector.load %arg2[%c0_1, %c0_2, %c0_3] : memref<1x4x256xbf16, #tpu.memory_space<vmem>>, vector<1x4x256xbf16>
    %2 = vector.shape_cast %1 : vector<1x4x256xbf16> to vector<4x256xbf16>
    %cst = arith.constant dense<0.000000e+00> : vector<24x256xf32>
    %3 = tpu.matmul %0, %2, %cst {dimension_numbers = #tpu.dot_dimension_numbers<[1], [0], [0], [1], [0, 0, 1, 1], [], []>} : vector<24x4xbf16>, vector<4x256xbf16>, vector<24x256xf32> -> vector<24x256xf32>
    %c0_4 = arith.constant 0 : index
    %c0_5 = arith.constant 0 : index
    %4 = vector.load %arg4[%c0_4, %c0_5] : memref<24x1xf32, #tpu.memory_space<vmem>>, vector<24x1xf32>
    %5 = vector.broadcast %4 : vector<24x1xf32> to vector<24x256xf32>
    %6 = arith.addf %3, %5 : vector<24x256xf32>
    %cst_6 = arith.constant 0.000000e+00 : f32
    %7 = vector.broadcast %cst_6 : f32 to vector<24x256xf32>
    %8 = arith.maximumf %6, %7 : vector<24x256xf32>
    %c0_7 = arith.constant 0 : index
    %c0_8 = arith.constant 0 : index
    %c0_9 = arith.constant 0 : index
    %9 = vector.load %arg5[%c0_7, %c0_8, %c0_9] : memref<1x24x256xf32, #tpu.memory_space<vmem>>, vector<1x24x256xf32>
    %10 = vector.shape_cast %9 : vector<1x24x256xf32> to vector<24x256xf32>
    %11 = vector.shape_cast %8 : vector<24x256xf32> to vector<1x24x256xf32>
    tpu.vector_store %arg5[%c0_7, %c0_8, %c0_9], %11 {strides = array<i32>} : memref<1x24x256xf32, #tpu.memory_space<vmem>>, vector<1x24x256xf32>,
    return
  }
  func.func @transform_0(%arg0: i32, %arg1: i32) -> (i32, i32, i32) {
    %c0_i32 = arith.constant 0 : i32
    %c0_i32_0 = arith.constant 0 : i32
    return %arg0, %c0_i32, %arg1 : i32, i32, i32
  }
  func.func @transform_1(%arg0: i32, %arg1: i32) -> (i32, i32) {
    %c0_i32 = arith.constant 0 : i32
    %c0_i32_0 = arith.constant 0 : i32
    %c0_i32_1 = arith.constant 0 : i32
    return %c0_i32, %c0_i32_0 : i32, i32
  }
  func.func @transform_2(%arg0: i32, %arg1: i32) -> (i32, i32) {
    %c0_i32 = arith.constant 0 : i32
    %c0_i32_0 = arith.constant 0 : i32
    %c0_i32_1 = arith.constant 0 : i32
    return %c0_i32, %c0_i32_0 : i32, i32
  }
  func.func @transform_3(%arg0: i32, %arg1: i32) -> (i32, i32, i32) {
    %c0_i32 = arith.constant 0 : i32
    %c0_i32_0 = arith.constant 0 : i32
    return %arg0, %c0_i32, %arg1 : i32, i32, i32
  }
}

module attributes {stable_mosaic.version = 11 : i64} {
  func.func @_conv1xk_kernel(%arg0: i32, %arg1: memref<1x8x324xbf16, #tpu.memory_space<vmem>>, %arg2: memref<5x8x8xbf16, #tpu.memory_space<vmem>>, %arg3: memref<8x1xf32, #tpu.memory_space<vmem>>, %arg4: memref<1x8x320xf32, #tpu.memory_space<vmem>>) attributes {dimension_semantics = [#tpu.dimension_semantics<parallel>], iteration_bounds = array<i64: 2>, scalar_prefetch = 0 : i64, scratch_operands = 0 : i64, tpu.core_type = #tpu.core_type<tc>, window_params = [{transform_indices = @transform_0, window_bounds = array<i64: 1, 8, 324>}, {pipeline_mode = #tpu.pipeline_mode<synchronous>, transform_indices = @transform_1, window_bounds = array<i64: 5, 8, 8>}, {pipeline_mode = #tpu.pipeline_mode<synchronous>, transform_indices = @transform_2, window_bounds = array<i64: 8, 1>}, {transform_indices = @transform_3, window_bounds = array<i64: 1, 8, 320>}]} {
    %c0 = arith.constant 0 : index
    %c0_0 = arith.constant 0 : index
    %c0_1 = arith.constant 0 : index
    %0 = vector.load %arg2[%c0, %c0_0, %c0_1] : memref<5x8x8xbf16, #tpu.memory_space<vmem>>, vector<1x8x8xbf16>
    %1 = vector.shape_cast %0 : vector<1x8x8xbf16> to vector<8x8xbf16>
    %c0_2 = arith.constant 0 : index
    %c0_3 = arith.constant 0 : index
    %c0_4 = arith.constant 0 : index
    %2 = vector.load %arg1[%c0_2, %c0_3, %c0_4] : memref<1x8x324xbf16, #tpu.memory_space<vmem>>, vector<1x8x320xbf16>
    %3 = vector.shape_cast %2 : vector<1x8x320xbf16> to vector<8x320xbf16>
    %cst = arith.constant dense<0.000000e+00> : vector<8x320xf32>
    %4 = tpu.matmul %1, %3, %cst {dimension_numbers = #tpu.dot_dimension_numbers<[1], [0], [0], [1], [0, 0, 1, 1], [], []>} : vector<8x8xbf16>, vector<8x320xbf16>, vector<8x320xf32> -> vector<8x320xf32>
    %c1 = arith.constant 1 : index
    %c0_5 = arith.constant 0 : index
    %c0_6 = arith.constant 0 : index
    %5 = vector.load %arg2[%c1, %c0_5, %c0_6] : memref<5x8x8xbf16, #tpu.memory_space<vmem>>, vector<1x8x8xbf16>
    %6 = vector.shape_cast %5 : vector<1x8x8xbf16> to vector<8x8xbf16>
    %c0_7 = arith.constant 0 : index
    %c0_8 = arith.constant 0 : index
    %c1_9 = arith.constant 1 : index
    %7 = vector.load %arg1[%c0_7, %c0_8, %c1_9] : memref<1x8x324xbf16, #tpu.memory_space<vmem>>, vector<1x8x320xbf16>
    %8 = vector.shape_cast %7 : vector<1x8x320xbf16> to vector<8x320xbf16>
    %cst_10 = arith.constant dense<0.000000e+00> : vector<8x320xf32>
    %9 = tpu.matmul %6, %8, %cst_10 {dimension_numbers = #tpu.dot_dimension_numbers<[1], [0], [0], [1], [0, 0, 1, 1], [], []>} : vector<8x8xbf16>, vector<8x320xbf16>, vector<8x320xf32> -> vector<8x320xf32>
    %10 = arith.addf %4, %9 : vector<8x320xf32>
    %c2 = arith.constant 2 : index
    %c0_11 = arith.constant 0 : index
    %c0_12 = arith.constant 0 : index
    %11 = vector.load %arg2[%c2, %c0_11, %c0_12] : memref<5x8x8xbf16, #tpu.memory_space<vmem>>, vector<1x8x8xbf16>
    %12 = vector.shape_cast %11 : vector<1x8x8xbf16> to vector<8x8xbf16>
    %c0_13 = arith.constant 0 : index
    %c0_14 = arith.constant 0 : index
    %c2_15 = arith.constant 2 : index
    %13 = vector.load %arg1[%c0_13, %c0_14, %c2_15] : memref<1x8x324xbf16, #tpu.memory_space<vmem>>, vector<1x8x320xbf16>
    %14 = vector.shape_cast %13 : vector<1x8x320xbf16> to vector<8x320xbf16>
    %cst_16 = arith.constant dense<0.000000e+00> : vector<8x320xf32>
    %15 = tpu.matmul %12, %14, %cst_16 {dimension_numbers = #tpu.dot_dimension_numbers<[1], [0], [0], [1], [0, 0, 1, 1], [], []>} : vector<8x8xbf16>, vector<8x320xbf16>, vector<8x320xf32> -> vector<8x320xf32>
    %16 = arith.addf %10, %15 : vector<8x320xf32>
    %c3 = arith.constant 3 : index
    %c0_17 = arith.constant 0 : index
    %c0_18 = arith.constant 0 : index
    %17 = vector.load %arg2[%c3, %c0_17, %c0_18] : memref<5x8x8xbf16, #tpu.memory_space<vmem>>, vector<1x8x8xbf16>
    %18 = vector.shape_cast %17 : vector<1x8x8xbf16> to vector<8x8xbf16>
    %c0_19 = arith.constant 0 : index
    %c0_20 = arith.constant 0 : index
    %c3_21 = arith.constant 3 : index
    %19 = vector.load %arg1[%c0_19, %c0_20, %c3_21] : memref<1x8x324xbf16, #tpu.memory_space<vmem>>, vector<1x8x320xbf16>
    %20 = vector.shape_cast %19 : vector<1x8x320xbf16> to vector<8x320xbf16>
    %cst_22 = arith.constant dense<0.000000e+00> : vector<8x320xf32>
    %21 = tpu.matmul %18, %20, %cst_22 {dimension_numbers = #tpu.dot_dimension_numbers<[1], [0], [0], [1], [0, 0, 1, 1], [], []>} : vector<8x8xbf16>, vector<8x320xbf16>, vector<8x320xf32> -> vector<8x320xf32>
    %22 = arith.addf %16, %21 : vector<8x320xf32>
    %c4 = arith.constant 4 : index
    %c0_23 = arith.constant 0 : index
    %c0_24 = arith.constant 0 : index
    %23 = vector.load %arg2[%c4, %c0_23, %c0_24] : memref<5x8x8xbf16, #tpu.memory_space<vmem>>, vector<1x8x8xbf16>
    %24 = vector.shape_cast %23 : vector<1x8x8xbf16> to vector<8x8xbf16>
    %c0_25 = arith.constant 0 : index
    %c0_26 = arith.constant 0 : index
    %c4_27 = arith.constant 4 : index
    %25 = vector.load %arg1[%c0_25, %c0_26, %c4_27] : memref<1x8x324xbf16, #tpu.memory_space<vmem>>, vector<1x8x320xbf16>
    %26 = vector.shape_cast %25 : vector<1x8x320xbf16> to vector<8x320xbf16>
    %cst_28 = arith.constant dense<0.000000e+00> : vector<8x320xf32>
    %27 = tpu.matmul %24, %26, %cst_28 {dimension_numbers = #tpu.dot_dimension_numbers<[1], [0], [0], [1], [0, 0, 1, 1], [], []>} : vector<8x8xbf16>, vector<8x320xbf16>, vector<8x320xf32> -> vector<8x320xf32>
    %28 = arith.addf %22, %27 : vector<8x320xf32>
    %c0_29 = arith.constant 0 : index
    %c0_30 = arith.constant 0 : index
    %29 = vector.load %arg3[%c0_29, %c0_30] : memref<8x1xf32, #tpu.memory_space<vmem>>, vector<8x1xf32>
    %30 = vector.broadcast %29 : vector<8x1xf32> to vector<8x320xf32>
    %31 = arith.addf %28, %30 : vector<8x320xf32>
    %cst_31 = arith.constant 0.000000e+00 : f32
    %32 = vector.broadcast %cst_31 : f32 to vector<8x320xf32>
    %33 = arith.maximumf %31, %32 : vector<8x320xf32>
    %c0_32 = arith.constant 0 : index
    %c0_33 = arith.constant 0 : index
    %c0_34 = arith.constant 0 : index
    %34 = vector.load %arg4[%c0_32, %c0_33, %c0_34] : memref<1x8x320xf32, #tpu.memory_space<vmem>>, vector<1x8x320xf32>
    %35 = vector.shape_cast %34 : vector<1x8x320xf32> to vector<8x320xf32>
    %36 = vector.shape_cast %33 : vector<8x320xf32> to vector<1x8x320xf32>
    tpu.vector_store %arg4[%c0_32, %c0_33, %c0_34], %36 {strides = array<i32>} : memref<1x8x320xf32, #tpu.memory_space<vmem>>, vector<1x8x320xf32>,
    return
  }
  func.func @transform_0(%arg0: i32) -> (i32, i32, i32) {
    %c0_i32 = arith.constant 0 : i32
    %c0_i32_0 = arith.constant 0 : i32
    %c0_i32_1 = arith.constant 0 : i32
    return %arg0, %c0_i32, %c0_i32_0 : i32, i32, i32
  }
  func.func @transform_1(%arg0: i32) -> (i32, i32, i32) {
    %c0_i32 = arith.constant 0 : i32
    %c0_i32_0 = arith.constant 0 : i32
    %c0_i32_1 = arith.constant 0 : i32
    %c0_i32_2 = arith.constant 0 : i32
    return %c0_i32, %c0_i32_0, %c0_i32_1 : i32, i32, i32
  }
  func.func @transform_2(%arg0: i32) -> (i32, i32) {
    %c0_i32 = arith.constant 0 : i32
    %c0_i32_0 = arith.constant 0 : i32
    %c0_i32_1 = arith.constant 0 : i32
    return %c0_i32, %c0_i32_0 : i32, i32
  }
  func.func @transform_3(%arg0: i32) -> (i32, i32, i32) {
    %c0_i32 = arith.constant 0 : i32
    %c0_i32_0 = arith.constant 0 : i32
    %c0_i32_1 = arith.constant 0 : i32
    return %arg0, %c0_i32, %c0_i32_0 : i32, i32, i32
  }
}

module attributes {stable_mosaic.version = 11 : i64} {
  func.func @_conv1xk_kernel(%arg0: i32, %arg1: memref<1x8x290xbf16, #tpu.memory_space<vmem>>, %arg2: memref<3x8x8xbf16, #tpu.memory_space<vmem>>, %arg3: memref<8x1xf32, #tpu.memory_space<vmem>>, %arg4: memref<1x8x288xf32, #tpu.memory_space<vmem>>) attributes {dimension_semantics = [#tpu.dimension_semantics<parallel>], iteration_bounds = array<i64: 2>, scalar_prefetch = 0 : i64, scratch_operands = 0 : i64, tpu.core_type = #tpu.core_type<tc>, window_params = [{transform_indices = @transform_0, window_bounds = array<i64: 1, 8, 290>}, {pipeline_mode = #tpu.pipeline_mode<synchronous>, transform_indices = @transform_1, window_bounds = array<i64: 3, 8, 8>}, {pipeline_mode = #tpu.pipeline_mode<synchronous>, transform_indices = @transform_2, window_bounds = array<i64: 8, 1>}, {transform_indices = @transform_3, window_bounds = array<i64: 1, 8, 288>}]} {
    %c0 = arith.constant 0 : index
    %c0_0 = arith.constant 0 : index
    %c0_1 = arith.constant 0 : index
    %0 = vector.load %arg2[%c0, %c0_0, %c0_1] : memref<3x8x8xbf16, #tpu.memory_space<vmem>>, vector<1x8x8xbf16>
    %1 = vector.shape_cast %0 : vector<1x8x8xbf16> to vector<8x8xbf16>
    %c0_2 = arith.constant 0 : index
    %c0_3 = arith.constant 0 : index
    %c0_4 = arith.constant 0 : index
    %2 = vector.load %arg1[%c0_2, %c0_3, %c0_4] : memref<1x8x290xbf16, #tpu.memory_space<vmem>>, vector<1x8x288xbf16>
    %3 = vector.shape_cast %2 : vector<1x8x288xbf16> to vector<8x288xbf16>
    %cst = arith.constant dense<0.000000e+00> : vector<8x288xf32>
    %4 = tpu.matmul %1, %3, %cst {dimension_numbers = #tpu.dot_dimension_numbers<[1], [0], [0], [1], [0, 0, 1, 1], [], []>} : vector<8x8xbf16>, vector<8x288xbf16>, vector<8x288xf32> -> vector<8x288xf32>
    %c1 = arith.constant 1 : index
    %c0_5 = arith.constant 0 : index
    %c0_6 = arith.constant 0 : index
    %5 = vector.load %arg2[%c1, %c0_5, %c0_6] : memref<3x8x8xbf16, #tpu.memory_space<vmem>>, vector<1x8x8xbf16>
    %6 = vector.shape_cast %5 : vector<1x8x8xbf16> to vector<8x8xbf16>
    %c0_7 = arith.constant 0 : index
    %c0_8 = arith.constant 0 : index
    %c1_9 = arith.constant 1 : index
    %7 = vector.load %arg1[%c0_7, %c0_8, %c1_9] : memref<1x8x290xbf16, #tpu.memory_space<vmem>>, vector<1x8x288xbf16>
    %8 = vector.shape_cast %7 : vector<1x8x288xbf16> to vector<8x288xbf16>
    %cst_10 = arith.constant dense<0.000000e+00> : vector<8x288xf32>
    %9 = tpu.matmul %6, %8, %cst_10 {dimension_numbers = #tpu.dot_dimension_numbers<[1], [0], [0], [1], [0, 0, 1, 1], [], []>} : vector<8x8xbf16>, vector<8x288xbf16>, vector<8x288xf32> -> vector<8x288xf32>
    %10 = arith.addf %4, %9 : vector<8x288xf32>
    %c2 = arith.constant 2 : index
    %c0_11 = arith.constant 0 : index
    %c0_12 = arith.constant 0 : index
    %11 = vector.load %arg2[%c2, %c0_11, %c0_12] : memref<3x8x8xbf16, #tpu.memory_space<vmem>>, vector<1x8x8xbf16>
    %12 = vector.shape_cast %11 : vector<1x8x8xbf16> to vector<8x8xbf16>
    %c0_13 = arith.constant 0 : index
    %c0_14 = arith.constant 0 : index
    %c2_15 = arith.constant 2 : index
    %13 = vector.load %arg1[%c0_13, %c0_14, %c2_15] : memref<1x8x290xbf16, #tpu.memory_space<vmem>>, vector<1x8x288xbf16>
    %14 = vector.shape_cast %13 : vector<1x8x288xbf16> to vector<8x288xbf16>
    %cst_16 = arith.constant dense<0.000000e+00> : vector<8x288xf32>
    %15 = tpu.matmul %12, %14, %cst_16 {dimension_numbers = #tpu.dot_dimension_numbers<[1], [0], [0], [1], [0, 0, 1, 1], [], []>} : vector<8x8xbf16>, vector<8x288xbf16>, vector<8x288xf32> -> vector<8x288xf32>
    %16 = arith.addf %10, %15 : vector<8x288xf32>
    %c0_17 = arith.constant 0 : index
    %c0_18 = arith.constant 0 : index
    %17 = vector.load %arg3[%c0_17, %c0_18] : memref<8x1xf32, #tpu.memory_space<vmem>>, vector<8x1xf32>
    %18 = vector.broadcast %17 : vector<8x1xf32> to vector<8x288xf32>
    %19 = arith.addf %16, %18 : vector<8x288xf32>
    %cst_19 = arith.constant 0.000000e+00 : f32
    %20 = vector.broadcast %cst_19 : f32 to vector<8x288xf32>
    %21 = arith.maximumf %19, %20 : vector<8x288xf32>
    %c0_20 = arith.constant 0 : index
    %c0_21 = arith.constant 0 : index
    %c0_22 = arith.constant 0 : index
    %22 = vector.load %arg4[%c0_20, %c0_21, %c0_22] : memref<1x8x288xf32, #tpu.memory_space<vmem>>, vector<1x8x288xf32>
    %23 = vector.shape_cast %22 : vector<1x8x288xf32> to vector<8x288xf32>
    %24 = vector.shape_cast %21 : vector<8x288xf32> to vector<1x8x288xf32>
    tpu.vector_store %arg4[%c0_20, %c0_21, %c0_22], %24 {strides = array<i32>} : memref<1x8x288xf32, #tpu.memory_space<vmem>>, vector<1x8x288xf32>,
    return
  }
  func.func @transform_0(%arg0: i32) -> (i32, i32, i32) {
    %c0_i32 = arith.constant 0 : i32
    %c0_i32_0 = arith.constant 0 : i32
    %c0_i32_1 = arith.constant 0 : i32
    return %arg0, %c0_i32, %c0_i32_0 : i32, i32, i32
  }
  func.func @transform_1(%arg0: i32) -> (i32, i32, i32) {
    %c0_i32 = arith.constant 0 : i32
    %c0_i32_0 = arith.constant 0 : i32
    %c0_i32_1 = arith.constant 0 : i32
    %c0_i32_2 = arith.constant 0 : i32
    return %c0_i32, %c0_i32_0, %c0_i32_1 : i32, i32, i32
  }
  func.func @transform_2(%arg0: i32) -> (i32, i32) {
    %c0_i32 = arith.constant 0 : i32
    %c0_i32_0 = arith.constant 0 : i32
    %c0_i32_1 = arith.constant 0 : i32
    return %c0_i32, %c0_i32_0 : i32, i32
  }
  func.func @transform_3(%arg0: i32) -> (i32, i32, i32) {
    %c0_i32 = arith.constant 0 : i32
    %c0_i32_0 = arith.constant 0 : i32
    %c0_i32_1 = arith.constant 0 : i32
    return %arg0, %c0_i32, %c0_i32_0 : i32, i32, i32
  }
}

</mosaic_0001>

<llo_original>
// kernel: inception_forward.7
$region0: #{inception_forward.7}
  #allocation0 [shape = 'u32[]', space=smem, size = 0x4, offset = 0x4, fixed_abs, tag = 'smem constant byte address 0x4 - core index']
  #allocation1 [shape = 'u32[144,128]{1,0:T(1,128)}', space=vmem, size = 0x12000, scoped, tag = 'internal scratch']
  %s0 = inlined_call_operand.vmem [shape: bf16[2,4,256], index: 0, kind: input, shape index: {}]
  %s1 = inlined_call_operand.vmem [shape: bf16[8,4], index: 1, kind: input, shape index: {}]
  %s2 = inlined_call_operand.vmem [shape: f32[8,1], index: 2, kind: input, shape index: {}]
  %s3 = inlined_call_operand.vmem [shape: f32[2,8,256], index: 3, kind: output, shape index: {}]
  %s4 = sld [smem:[#allocation0]]
  $region45: #{inception_forward.7} parent=0
    _
  %s6 = ssub.s32 1, %s4
  %s7 = scalar_select 0, %s6, %s4
  loop: start=0, step=1, limit=4
  $region2: #{inception_forward.7} parent=0 // loop_pre_header
    _
  $region3: #{inception_forward.7} parent=0 // loop_header
    %s9 = sphi 0, %s13
    %p10 = scmp.ge.s32.totalorder %s9, 4
    %s16 = sphi 0, %s28
    %s17 = sphi 0, %s24
    %s18 = sphi 0, %s16
    %s19 = sphi 0, %s17
    %s20 = sphi 0, %s18
    %s21 = sphi 0, %s19
    %s33 = sphi 0, %s35
    %s36 = sphi 0, %s33
    %s37 = sphi 0, %s36
    %s53 = sphi 0, %s37
    %s57 = sphi 0, %s57
    %s59 = sphi 0, %s57
    %s60 = sphi 0, %s59
    %s74 = sphi 0, %s60
    %s78 = sphi 0, %s78
    %s80 = sphi 0, %s78
    %s81 = sphi 0, %s80
    %s95 = sphi 0, %s81
    %s103 = sphi 0, %s105
    %s106 = sphi 0, %s103
    %s107 = sphi 0, %s106
    %s123 = sphi 0, %s107
  $region4: #{inception_forward.7} parent=0 // loop_header_branch
    %12 = sbr.rel (%p10) target = $region8
  $region5: #{inception_forward.7} parent=0 // loop_body
    %s14 = ssub.s32 %s9, 1
    %s15 = ssub.s32 %s9, 2
    %s22 = sadd.s32 1, %s17
    %p23 = scmp.ge.s32.totalorder %s22, 1
    %s24 = scalar_select %p23, 0, %s22
    %s25 = sadd.s32 1, %s16
    %s26 = scalar_select %p23, %s25, %s16
    %p27 = scmp.ge.s32.totalorder %s26, 2
    %s28 = scalar_select %p27, 0, %s26
    %s29 = ssub.s32 %s16, %s28
    %s30 = ssub.s32 %s17, %s24
    %s31 = sor.u32 %s29, %s30
    %p32 = scmp.eq.s32.totalorder %s31, 0
    %s34 = sadd.s32 %s33, 1
    %s35 = scalar_select %p32, %s33, %s34
    %p38 = pneg %p32
    %p39 = scmp.eq.s32.totalorder %s9, 1
    %p40 = por %p38, %p39
    %p41 = scmp.ne.s32.totalorder %s33, %s36
    %p42 = scmp.eq.s32.totalorder %s9, 0
    %p43 = por %p41, %p42
    %p44 = scmp.ne.s32.totalorder %s33, %s36
    %p45 = scmp.eq.s32.totalorder %s14, 1
    %p46 = por %p44, %p45
    %p47 = scmp.ne.s32.totalorder %s36, %s37
    %p48 = scmp.eq.s32.totalorder %s14, 0
    %p49 = por %p47, %p48
    %p50 = scmp.ne.s32.totalorder %s36, %s37
    %p51 = scmp.eq.s32.totalorder %s15, 1
    %p52 = por %p50, %p51
    %p54 = scmp.ne.s32.totalorder %s37, %s53
    %p55 = scmp.eq.s32.totalorder %s15, 0
    %p56 = por %p54, %p55
    %s58 = sadd.s32 %s57, 1
    %p61 = scmp.eq.s32.totalorder %s9, 1
    %p62 = scmp.ne.s32.totalorder %s57, %s59
    %p63 = scmp.eq.s32.totalorder %s9, 0
    %p64 = por %p62, %p63
    %p65 = scmp.ne.s32.totalorder %s57, %s59
    %p66 = scmp.eq.s32.totalorder %s14, 1
    %p67 = por %p65, %p66
    %p68 = scmp.ne.s32.totalorder %s59, %s60
    %p69 = scmp.eq.s32.totalorder %s14, 0
    %p70 = por %p68, %p69
    %p71 = scmp.ne.s32.totalorder %s59, %s60
    %p72 = scmp.eq.s32.totalorder %s15, 1
    %p73 = por %p71, %p72
    %p75 = scmp.ne.s32.totalorder %s60, %s74
    %p76 = scmp.eq.s32.totalorder %s15, 0
    %p77 = por %p75, %p76
    %s79 = sadd.s32 %s78, 1
    %p82 = scmp.eq.s32.totalorder %s9, 1
    %p83 = scmp.ne.s32.totalorder %s78, %s80
    %p84 = scmp.eq.s32.totalorder %s9, 0
    %p85 = por %p83, %p84
    %p86 = scmp.ne.s32.totalorder %s78, %s80
    %p87 = scmp.eq.s32.totalorder %s14, 1
    %p88 = por %p86, %p87
    %p89 = scmp.ne.s32.totalorder %s80, %s81
    %p90 = scmp.eq.s32.totalorder %s14, 0
    %p91 = por %p89, %p90
    %p92 = scmp.ne.s32.totalorder %s80, %s81
    %p93 = scmp.eq.s32.totalorder %s15, 1
    %p94 = por %p92, %p93
    %p96 = scmp.ne.s32.totalorder %s81, %s95
    %p97 = scmp.eq.s32.totalorder %s15, 0
    %p98 = por %p96, %p97
    %s99 = ssub.s32 %s16, %s28
    %s100 = ssub.s32 %s17, %s24
    %s101 = sor.u32 %s99, %s100
    %p102 = scmp.eq.s32.totalorder %s101, 0
    %s104 = sadd.s32 %s103, 1
    %s105 = scalar_select %p102, %s103, %s104
    %p108 = pneg %p102
    %p109 = scmp.eq.s32.totalorder %s9, 1
    %p110 = por %p108, %p109
    %p111 = scmp.ne.s32.totalorder %s103, %s106
    %p112 = scmp.eq.s32.totalorder %s9, 0
    %p113 = por %p111, %p112
    %p114 = scmp.ne.s32.totalorder %s103, %s106
    %p115 = scmp.eq.s32.totalorder %s14, 1
    %p116 = por %p114, %p115
    %p117 = scmp.ne.s32.totalorder %s106, %s107
    %p118 = scmp.eq.s32.totalorder %s14, 0
    %p119 = por %p117, %p118
    %p120 = scmp.ne.s32.totalorder %s106, %s107
    %p121 = scmp.eq.s32.totalorder %s15, 1
    %p122 = por %p120, %p121
    %p124 = scmp.ne.s32.totalorder %s107, %s123
    %p125 = scmp.eq.s32.totalorder %s15, 0
    %p126 = por %p124, %p125
    %p127 = scmp.le.s32.totalorder 1, %s9
    %p128 = scmp.lt.s32.totalorder %s9, 3
    %p129 = pnand %p127, %p128
    %p130 = pneg %p129
    // Predicated region
    $region9: #{inception_forward.7} parent=5 // pred_check
      _
    $region10: #{inception_forward.7} parent=5 // pred_check_branch
      %132 = sbr.rel (%p129) target = $region12
    $region11: #{inception_forward.7} parent=5 // pred_region
      %s133 = ssub.s32 %s9, 1
      // Predicated region
      $region13: #{inception_forward.7} parent=11 // pred_check
        %p134 = pneg %p70
      $region14: #{inception_forward.7} parent=11 // pred_check_branch
        %136 = sbr.rel (%p134) target = $region16
      $region15: #{inception_forward.7} parent=11 // pred_region
        _
      $region16: #{inception_forward.7} parent=11 // pred_fallthru
        _
      // Predicated region
      $region17: #{inception_forward.7} parent=11 // pred_check
        %p137 = pneg %p91
      $region18: #{inception_forward.7} parent=11 // pred_check_branch
        %139 = sbr.rel (%p137) target = $region20
      $region19: #{inception_forward.7} parent=11 // pred_region
        _
      $region20: #{inception_forward.7} parent=11 // pred_fallthru
        _
    $region12: #{inception_forward.7} parent=5 // pred_fallthru
      _
    %p140 = scmp.lt.s32.totalorder %s9, 2
    // Predicated region
    $region21: #{inception_forward.7} parent=5 // pred_check
      %p141 = pneg %p140
    $region22: #{inception_forward.7} parent=5 // pred_check_branch
      %143 = sbr.rel (%p141) target = $region24
    $region23: #{inception_forward.7} parent=5 // pred_region
      // Predicated region
      $region25: #{inception_forward.7} parent=23 // pred_check
        %p144 = pneg %p43
      $region26: #{inception_forward.7} parent=23 // pred_check_branch
        %146 = sbr.rel (%p144) target = $region28
      $region27: #{inception_forward.7} parent=23 // pred_region
        %s147 = smul.u32 2, %s17
        %p148 = scmp.lt.s32.totalorder %s16, 1
        %s149 = scalar_select %p148, %s16, 1
        %p150 = scmp.lt.s32.totalorder %s147, 1
        %s151 = scalar_select %p150, %s147, 1
        %s152 = smul.addr %s149, 2
        %s153 = sadd.s32 %s151, %s152
        %s154 = smul.addr %s153, 2
        %s155 = scalar_lea.vmem %s0, %s154
        %s156 = smul.u32 2, %s17
      $region28: #{inception_forward.7} parent=23 // pred_fallthru
        _
    $region24: #{inception_forward.7} parent=5 // pred_fallthru
      _
    %p157 = scmp.le.s32.totalorder 1, %s9
    %p158 = scmp.lt.s32.totalorder %s9, 3
    %p159 = pnand %p157, %p158
    %p160 = pneg %p159
    // Predicated region
    $region29: #{inception_forward.7} parent=5 // pred_check
      _
    $region30: #{inception_forward.7} parent=5 // pred_check_branch
      %162 = sbr.rel (%p159) target = $region32
    $region31: #{inception_forward.7} parent=5 // pred_region
      %s163 = ssub.s32 %s9, 1
      %s164 = smul.u32 2, %s19
      %p165 = scmp.lt.s32.totalorder %s18, 1
      %s166 = scalar_select %p165, %s18, 1
      %p167 = scmp.lt.s32.totalorder %s164, 1
      %s168 = scalar_select %p167, %s164, 1
      %s169 = smul.addr %s166, 2
      %s170 = sadd.s32 %s168, %s169
      %s171 = smul.addr %s170, 2
      %s172 = scalar_lea.vmem %s0, %s171
      %p173 = pneg %p49
      %p174 = pneg %p46
      %p175 = pneg %p70
      %p176 = pneg %p67
      %p177 = pneg %p91
      %p178 = pneg %p88
      %p179 = pneg %p119
      %p180 = pneg %p116
      %s181 = smul.u32 2, %s19
      %p182 = scmp.lt.s32.totalorder %s18, 1
      %s183 = scalar_select %p182, %s18, 1
      %p184 = scmp.lt.s32.totalorder %s181, 1
      %s185 = scalar_select %p184, %s181, 1
      %s186 = smul.addr %s183, 2
      %s187 = sadd.s32 %s185, %s186
      %s188 = smul.addr %s187, 8
      %s189 = scalar_lea.vmem %s3, %s188
      %s190 = smul.u32 2, %s19
      %p191 = scmp.lt.s32.totalorder %s18, 1
      %s192 = scalar_select %p191, %s18, 1
      %p193 = scmp.lt.s32.totalorder %s190, 1
      %s194 = scalar_select %p193, %s190, 1
      %s195 = smul.addr %s192, 2
      %s196 = sadd.s32 %s194, %s195
      %s197 = smul.addr %s196, 2
      %s198 = scalar_lea.vmem %s0, %s197
      %s199 = smul.u32 2, %s19
      %s200 = smul.u32 2, %s19
      %p201 = scmp.lt.s32.totalorder %s18, 1
      %s202 = scalar_select %p201, %s18, 1
      %p203 = scmp.lt.s32.totalorder %s200, 1
      %s204 = scalar_select %p203, %s200, 1
      %s205 = smul.addr %s202, 2
      %s206 = sadd.s32 %s204, %s205
      %s207 = smul.addr %s206, 8
      %s208 = scalar_lea.vmem %s3, %s207
      %s209 = smul.u32 2, %s19
      %v211 = vld [vmem:[%s1] sm:$0xf]
      %v212 = vld [vmem:[%s198] sm:$0xf]
      %v213 = vld [vmem:[%s2] sm:$0xff]
      %215 = vset.pattern.permute.xlu0 0
      %216 = vperm.xlu0 %215, %v213
      %v217 = vpop.permute.xlu0 %216
      %v221 = vunpack.c.l.s4 1983009808
      %v222 = vunpack.c.0.s8 %v221
      %v223 = vlaneseq
      %v224 = vshrl.u32 %v223, 7
      %v225 = vsub.s32 %v222, %v224
      %v226 = vrot.slane %v212, %v225
      %v227 = vcombine.high %v226, %v226
      %vm228 = vcmask 31744
      %v230 = vsel %vm228, %v211, 0
      %vm232 = vcmask 1041408
      %v234 = vsel %vm232, %v226, 0
      %v237 = vsel %vm232, %v227, 0
      %239 = vmatprep.subr.bf16.mxu0 %v237
      %240 = vmatpush1.bf16.msra.mxu0 %v234
      %241 = vmatprep.subr.bf16.mxu0 0
      %242 = vmatpush1.bf16.msra.mxu0 0
      %243 = vmatprep.subr.bf16.mxu0 0
      %244 = vmatpush1.bf16.msra.mxu0 0
      %245 = vmatprep.subr.bf16.mxu0 0
      %246 = vmatpush1.bf16.msra.mxu0 0
      %247 = vmatprep.subr.bf16.mxu0 0
      %248 = vmatpush1.bf16.msra.mxu0 0
      %249 = vmatprep.subr.bf16.mxu0 0
      %250 = vmatpush1.bf16.msra.mxu0 0
      %251 = vmatprep.subr.bf16.mxu0 0
      %252 = vmatpush1.bf16.msra.mxu0 0
      %253 = vmatprep.subr.bf16.mxu0 0
      %254 = vmatpush1.bf16.msra.mxu0 0
      %255 = vmatprep.subr.bf16.mxu0 0
      %256 = vmatpush1.bf16.msra.mxu0 0
      %257 = vmatprep.subr.bf16.mxu0 0
      %258 = vmatpush1.bf16.msra.mxu0 0
      %259 = vmatprep.subr.bf16.mxu0 0
      %260 = vmatpush1.bf16.msra.mxu0 0
      %261 = vmatprep.subr.bf16.mxu0 0
      %262 = vmatpush1.bf16.msra.mxu0 0
      %263 = vmatprep.subr.bf16.mxu0 0
      %264 = vmatpush1.bf16.msra.mxu0 0
      %265 = vmatprep.subr.bf16.mxu0 0
      %266 = vmatpush1.bf16.msra.mxu0 0
      %267 = vmatprep.subr.bf16.mxu0 0
      %268 = vmatpush1.bf16.msra.mxu0 0
      %269 = vmatprep.subr.bf16.mxu0 0
      %270 = vmatpush1.bf16.msra.mxu0 0
      %271 = vmatprep.mubr.bf16.mxu0 0
      %272 = vmatmul.mubr.bf16.gmra.mrb[0].mxu0 %v230
      %v273 = vpop.f32.mrb[0].mxu0
      %v274 = vadd.f32 %v217, %v273
      %v275 = vpop.f32.mrb[0].mxu0
      %v276 = vadd.f32 %v217, %v275
      %v277 = vpop.f32.mrb[0].mxu0
      %v278 = vpop.f32.mrb[0].mxu0
      %279 = vdwg.mxu0
      %v280 = vmax.f32 %v274, 0.0
      %v281 = vmax.f32 %v276, 0.0
      %282 = vst [vmem:[%s208] sm:$0xff] %v280
      %283 = vst [vmem:[%s208 + $0x8] sm:$0xff] %v281
      %s284 = smul.u32 2, %s19
      %p285 = scmp.lt.s32.totalorder %s18, 1
      %s286 = scalar_select %p285, %s18, 1
      %p287 = scmp.lt.s32.totalorder %s284, 1
      %s288 = scalar_select %p287, %s284, 1
      %s289 = smul.addr %s286, 2
      %s290 = sadd.s32 %s288, %s289
      %s291 = smul.addr %s290, 8
      %s292 = scalar_lea.vmem %s3, %s291
      // Predicated region
      $region33: #{inception_forward.7} parent=31 // pred_check
        %p293 = pneg %p116
      $region34: #{inception_forward.7} parent=31 // pred_check_branch
        %295 = sbr.rel (%p293) target = $region36
      $region35: #{inception_forward.7} parent=31 // pred_region
        %s296 = smul.u32 2, %s19
      $region36: #{inception_forward.7} parent=31 // pred_fallthru
        _
    $region32: #{inception_forward.7} parent=5 // pred_fallthru
      _
    %p297 = scmp.le.s32.totalorder 2, %s9
    // Predicated region
    $region37: #{inception_forward.7} parent=5 // pred_check
      %p298 = pneg %p297
    $region38: #{inception_forward.7} parent=5 // pred_check_branch
      %300 = sbr.rel (%p298) target = $region40
    $region39: #{inception_forward.7} parent=5 // pred_region
      %s301 = ssub.s32 %s9, 2
      // Predicated region
      $region41: #{inception_forward.7} parent=39 // pred_check
        %p302 = pneg %p122
      $region42: #{inception_forward.7} parent=39 // pred_check_branch
        %304 = sbr.rel (%p302) target = $region44
      $region43: #{inception_forward.7} parent=39 // pred_region
        %s305 = smul.u32 2, %s21
        %p306 = scmp.lt.s32.totalorder %s20, 1
        %s307 = scalar_select %p306, %s20, 1
        %p308 = scmp.lt.s32.totalorder %s305, 1
        %s309 = scalar_select %p308, %s305, 1
        %s310 = smul.addr %s307, 2
        %s311 = sadd.s32 %s309, %s310
        %s312 = smul.addr %s311, 8
        %s313 = scalar_lea.vmem %s3, %s312
      $region44: #{inception_forward.7} parent=39 // pred_fallthru
        _
    $region40: #{inception_forward.7} parent=5 // pred_fallthru
      _
  $region6: #{inception_forward.7} parent=0 // loop_footer
    %s13 = sadd.s32 1, %s9
  $region7: #{inception_forward.7} parent=0 // loop_footer_branch
    %8 = sbr.rel target = $region3
  $region8: #{inception_forward.7} parent=0 // loop_exit
    _

// kernel: inception_forward.4
$region0: #{inception_forward.4}
  #allocation0 [shape = 'u32[]', space=smem, size = 0x4, offset = 0x4, fixed_abs, tag = 'smem constant byte address 0x4 - core index']
  #allocation1 [shape = 'u32[144,128]{1,0:T(1,128)}', space=vmem, size = 0x12000, scoped, tag = 'internal scratch']
  %s0 = inlined_call_operand.vmem [shape: bf16[2,4,256], index: 0, kind: input, shape index: {}]
  %s1 = inlined_call_operand.vmem [shape: bf16[24,4], index: 1, kind: input, shape index: {}]
  %s2 = inlined_call_operand.vmem [shape: f32[24,1], index: 2, kind: input, shape index: {}]
  %s3 = inlined_call_operand.vmem [shape: f32[2,24,256], index: 3, kind: output, shape index: {}]
  %s4 = sld [smem:[#allocation0]]
  $region45: #{inception_forward.4} parent=0
    _
  %s6 = ssub.s32 1, %s4
  %s7 = scalar_select 0, %s6, %s4
  loop: start=0, step=1, limit=4
  $region2: #{inception_forward.4} parent=0 // loop_pre_header
    _
  $region3: #{inception_forward.4} parent=0 // loop_header
    %s9 = sphi 0, %s13
    %p10 = scmp.ge.s32.totalorder %s9, 4
    %s16 = sphi 0, %s28
    %s17 = sphi 0, %s24
    %s18 = sphi 0, %s16
    %s19 = sphi 0, %s17
    %s20 = sphi 0, %s18
    %s21 = sphi 0, %s19
    %s33 = sphi 0, %s35
    %s36 = sphi 0, %s33
    %s37 = sphi 0, %s36
    %s53 = sphi 0, %s37
    %s57 = sphi 0, %s57
    %s59 = sphi 0, %s57
    %s60 = sphi 0, %s59
    %s74 = sphi 0, %s60
    %s78 = sphi 0, %s78
    %s80 = sphi 0, %s78
    %s81 = sphi 0, %s80
    %s95 = sphi 0, %s81
    %s103 = sphi 0, %s105
    %s106 = sphi 0, %s103
    %s107 = sphi 0, %s106
    %s123 = sphi 0, %s107
  $region4: #{inception_forward.4} parent=0 // loop_header_branch
    %12 = sbr.rel (%p10) target = $region8
  $region5: #{inception_forward.4} parent=0 // loop_body
    %s14 = ssub.s32 %s9, 1
    %s15 = ssub.s32 %s9, 2
    %s22 = sadd.s32 1, %s17
    %p23 = scmp.ge.s32.totalorder %s22, 1
    %s24 = scalar_select %p23, 0, %s22
    %s25 = sadd.s32 1, %s16
    %s26 = scalar_select %p23, %s25, %s16
    %p27 = scmp.ge.s32.totalorder %s26, 2
    %s28 = scalar_select %p27, 0, %s26
    %s29 = ssub.s32 %s16, %s28
    %s30 = ssub.s32 %s17, %s24
    %s31 = sor.u32 %s29, %s30
    %p32 = scmp.eq.s32.totalorder %s31, 0
    %s34 = sadd.s32 %s33, 1
    %s35 = scalar_select %p32, %s33, %s34
    %p38 = pneg %p32
    %p39 = scmp.eq.s32.totalorder %s9, 1
    %p40 = por %p38, %p39
    %p41 = scmp.ne.s32.totalorder %s33, %s36
    %p42 = scmp.eq.s32.totalorder %s9, 0
    %p43 = por %p41, %p42
    %p44 = scmp.ne.s32.totalorder %s33, %s36
    %p45 = scmp.eq.s32.totalorder %s14, 1
    %p46 = por %p44, %p45
    %p47 = scmp.ne.s32.totalorder %s36, %s37
    %p48 = scmp.eq.s32.totalorder %s14, 0
    %p49 = por %p47, %p48
    %p50 = scmp.ne.s32.totalorder %s36, %s37
    %p51 = scmp.eq.s32.totalorder %s15, 1
    %p52 = por %p50, %p51
    %p54 = scmp.ne.s32.totalorder %s37, %s53
    %p55 = scmp.eq.s32.totalorder %s15, 0
    %p56 = por %p54, %p55
    %s58 = sadd.s32 %s57, 1
    %p61 = scmp.eq.s32.totalorder %s9, 1
    %p62 = scmp.ne.s32.totalorder %s57, %s59
    %p63 = scmp.eq.s32.totalorder %s9, 0
    %p64 = por %p62, %p63
    %p65 = scmp.ne.s32.totalorder %s57, %s59
    %p66 = scmp.eq.s32.totalorder %s14, 1
    %p67 = por %p65, %p66
    %p68 = scmp.ne.s32.totalorder %s59, %s60
    %p69 = scmp.eq.s32.totalorder %s14, 0
    %p70 = por %p68, %p69
    %p71 = scmp.ne.s32.totalorder %s59, %s60
    %p72 = scmp.eq.s32.totalorder %s15, 1
    %p73 = por %p71, %p72
    %p75 = scmp.ne.s32.totalorder %s60, %s74
    %p76 = scmp.eq.s32.totalorder %s15, 0
    %p77 = por %p75, %p76
    %s79 = sadd.s32 %s78, 1
    %p82 = scmp.eq.s32.totalorder %s9, 1
    %p83 = scmp.ne.s32.totalorder %s78, %s80
    %p84 = scmp.eq.s32.totalorder %s9, 0
    %p85 = por %p83, %p84
    %p86 = scmp.ne.s32.totalorder %s78, %s80
    %p87 = scmp.eq.s32.totalorder %s14, 1
    %p88 = por %p86, %p87
    %p89 = scmp.ne.s32.totalorder %s80, %s81
    %p90 = scmp.eq.s32.totalorder %s14, 0
    %p91 = por %p89, %p90
    %p92 = scmp.ne.s32.totalorder %s80, %s81
    %p93 = scmp.eq.s32.totalorder %s15, 1
    %p94 = por %p92, %p93
    %p96 = scmp.ne.s32.totalorder %s81, %s95
    %p97 = scmp.eq.s32.totalorder %s15, 0
    %p98 = por %p96, %p97
    %s99 = ssub.s32 %s16, %s28
    %s100 = ssub.s32 %s17, %s24
    %s101 = sor.u32 %s99, %s100
    %p102 = scmp.eq.s32.totalorder %s101, 0
    %s104 = sadd.s32 %s103, 1
    %s105 = scalar_select %p102, %s103, %s104
    %p108 = pneg %p102
    %p109 = scmp.eq.s32.totalorder %s9, 1
    %p110 = por %p108, %p109
    %p111 = scmp.ne.s32.totalorder %s103, %s106
    %p112 = scmp.eq.s32.totalorder %s9, 0
    %p113 = por %p111, %p112
    %p114 = scmp.ne.s32.totalorder %s103, %s106
    %p115 = scmp.eq.s32.totalorder %s14, 1
    %p116 = por %p114, %p115
    %p117 = scmp.ne.s32.totalorder %s106, %s107
    %p118 = scmp.eq.s32.totalorder %s14, 0
    %p119 = por %p117, %p118
    %p120 = scmp.ne.s32.totalorder %s106, %s107
    %p121 = scmp.eq.s32.totalorder %s15, 1
    %p122 = por %p120, %p121
    %p124 = scmp.ne.s32.totalorder %s107, %s123
    %p125 = scmp.eq.s32.totalorder %s15, 0
    %p126 = por %p124, %p125
    %p127 = scmp.le.s32.totalorder 1, %s9
    %p128 = scmp.lt.s32.totalorder %s9, 3
    %p129 = pnand %p127, %p128
    %p130 = pneg %p129
    // Predicated region
    $region9: #{inception_forward.4} parent=5 // pred_check
      _
    $region10: #{inception_forward.4} parent=5 // pred_check_branch
      %132 = sbr.rel (%p129) target = $region12
    $region11: #{inception_forward.4} parent=5 // pred_region
      %s133 = ssub.s32 %s9, 1
      // Predicated region
      $region13: #{inception_forward.4} parent=11 // pred_check
        %p134 = pneg %p70
      $region14: #{inception_forward.4} parent=11 // pred_check_branch
        %136 = sbr.rel (%p134) target = $region16
      $region15: #{inception_forward.4} parent=11 // pred_region
        _
      $region16: #{inception_forward.4} parent=11 // pred_fallthru
        _
      // Predicated region
      $region17: #{inception_forward.4} parent=11 // pred_check
        %p137 = pneg %p91
      $region18: #{inception_forward.4} parent=11 // pred_check_branch
        %139 = sbr.rel (%p137) target = $region20
      $region19: #{inception_forward.4} parent=11 // pred_region
        _
      $region20: #{inception_forward.4} parent=11 // pred_fallthru
        _
    $region12: #{inception_forward.4} parent=5 // pred_fallthru
      _
    %p140 = scmp.lt.s32.totalorder %s9, 2
    // Predicated region
    $region21: #{inception_forward.4} parent=5 // pred_check
      %p141 = pneg %p140
    $region22: #{inception_forward.4} parent=5 // pred_check_branch
      %143 = sbr.rel (%p141) target = $region24
    $region23: #{inception_forward.4} parent=5 // pred_region
      // Predicated region
      $region25: #{inception_forward.4} parent=23 // pred_check
        %p144 = pneg %p43
      $region26: #{inception_forward.4} parent=23 // pred_check_branch
        %146 = sbr.rel (%p144) target = $region28
      $region27: #{inception_forward.4} parent=23 // pred_region
        %s147 = smul.u32 2, %s17
        %p148 = scmp.lt.s32.totalorder %s16, 1
        %s149 = scalar_select %p148, %s16, 1
        %p150 = scmp.lt.s32.totalorder %s147, 1
        %s151 = scalar_select %p150, %s147, 1
        %s152 = smul.addr %s149, 2
        %s153 = sadd.s32 %s151, %s152
        %s154 = smul.addr %s153, 2
        %s155 = scalar_lea.vmem %s0, %s154
        %s156 = smul.u32 2, %s17
      $region28: #{inception_forward.4} parent=23 // pred_fallthru
        _
    $region24: #{inception_forward.4} parent=5 // pred_fallthru
      _
    %p157 = scmp.le.s32.totalorder 1, %s9
    %p158 = scmp.lt.s32.totalorder %s9, 3
    %p159 = pnand %p157, %p158
    %p160 = pneg %p159
    // Predicated region
    $region29: #{inception_forward.4} parent=5 // pred_check
      _
    $region30: #{inception_forward.4} parent=5 // pred_check_branch
      %162 = sbr.rel (%p159) target = $region32
    $region31: #{inception_forward.4} parent=5 // pred_region
      %s163 = ssub.s32 %s9, 1
      %s164 = smul.u32 2, %s19
      %p165 = scmp.lt.s32.totalorder %s18, 1
      %s166 = scalar_select %p165, %s18, 1
      %p167 = scmp.lt.s32.totalorder %s164, 1
      %s168 = scalar_select %p167, %s164, 1
      %s169 = smul.addr %s166, 2
      %s170 = sadd.s32 %s168, %s169
      %s171 = smul.addr %s170, 2
      %s172 = scalar_lea.vmem %s0, %s171
      %p173 = pneg %p49
      %p174 = pneg %p46
      %p175 = pneg %p70
      %p176 = pneg %p67
      %p177 = pneg %p91
      %p178 = pneg %p88
      %p179 = pneg %p119
      %p180 = pneg %p116
      %s181 = smul.u32 2, %s19
      %p182 = scmp.lt.s32.totalorder %s18, 1
      %s183 = scalar_select %p182, %s18, 1
      %p184 = scmp.lt.s32.totalorder %s181, 1
      %s185 = scalar_select %p184, %s181, 1
      %s186 = smul.addr %s183, 6
      %s187 = sadd.s32 %s185, %s186
      %s188 = smul.addr %s187, 8
      %s189 = scalar_lea.vmem %s3, %s188
      %s190 = smul.u32 2, %s19
      %p191 = scmp.lt.s32.totalorder %s18, 1
      %s192 = scalar_select %p191, %s18, 1
      %p193 = scmp.lt.s32.totalorder %s190, 1
      %s194 = scalar_select %p193, %s190, 1
      %s195 = smul.addr %s192, 2
      %s196 = sadd.s32 %s194, %s195
      %s197 = smul.addr %s196, 2
      %s198 = scalar_lea.vmem %s0, %s197
      %s199 = smul.u32 2, %s19
      %s200 = smul.u32 2, %s19
      %p201 = scmp.lt.s32.totalorder %s18, 1
      %s202 = scalar_select %p201, %s18, 1
      %p203 = scmp.lt.s32.totalorder %s200, 1
      %s204 = scalar_select %p203, %s200, 1
      %s205 = smul.addr %s202, 6
      %s206 = sadd.s32 %s204, %s205
      %s207 = smul.addr %s206, 8
      %s208 = scalar_lea.vmem %s3, %s207
      %s209 = smul.u32 2, %s19
      %v211 = vld [vmem:[%s1] sm:$0xf]
      %v212 = vld [vmem:[%s1 + $0x4] sm:$0xf]
      %v213 = vld [vmem:[%s1 + $0x8] sm:$0xf]
      %v214 = vld [vmem:[%s198] sm:$0xf]
      %v215 = vld [vmem:[%s2] sm:$0xff]
      %v216 = vld [vmem:[%s2 + $0x8] sm:$0xff]
      %v217 = vld [vmem:[%s2 + $0x10] sm:$0xff]
      %219 = vset.pattern.permute.xlu0 0
      %220 = vperm.xlu0 %219, %v215
      %v221 = vpop.permute.xlu0 %220
      %224 = vset.pattern.permute.xlu0 0
      %225 = vperm.xlu0 %224, %v216
      %v226 = vpop.permute.xlu0 %225
      %229 = vset.pattern.permute.xlu0 0
      %230 = vperm.xlu0 %229, %v217
      %v231 = vpop.permute.xlu0 %230
      %v236 = vunpack.c.l.b16 %v211
      %v237 = vunpack.c.l.b16 %v212
      %v238 = vunpack.c.l.b16 %v213
      %v239 = vpack.c.b16 %v237, %v236
      %v240 = vpack.c.b16 %v238, %v238
      %v243 = vunpack.c.l.s4 1983009808
      %v244 = vunpack.c.0.s8 %v243
      %v245 = vlaneseq
      %v246 = vshrl.u32 %v245, 7
      %v247 = vsub.s32 %v244, %v246
      %v248 = vrot.slane %v214, %v247
      %v249 = vcombine.high %v248, %v248
      %vm250 = vcmask 31744
      %v252 = vsel %vm250, %v239, 0
      %v255 = vsel %vm250, %v240, 0
      %vm257 = vcmask 1041408
      %v259 = vsel %vm257, %v248, 0
      %v262 = vsel %vm257, %v249, 0
      %264 = vmatprep.subr.bf16.mxu0 %v262
      %265 = vmatpush1.bf16.msra.mxu0 %v259
      %266 = vmatprep.subr.bf16.mxu0 0
      %267 = vmatpush1.bf16.msra.mxu0 0
      %268 = vmatprep.subr.bf16.mxu0 0
      %269 = vmatpush1.bf16.msra.mxu0 0
      %270 = vmatprep.subr.bf16.mxu0 0
      %271 = vmatpush1.bf16.msra.mxu0 0
      %272 = vmatprep.subr.bf16.mxu0 0
      %273 = vmatpush1.bf16.msra.mxu0 0
      %274 = vmatprep.subr.bf16.mxu0 0
      %275 = vmatpush1.bf16.msra.mxu0 0
      %276 = vmatprep.subr.bf16.mxu0 0
      %277 = vmatpush1.bf16.msra.mxu0 0
      %278 = vmatprep.subr.bf16.mxu0 0
      %279 = vmatpush1.bf16.msra.mxu0 0
      %280 = vmatprep.subr.bf16.mxu0 0
      %281 = vmatpush1.bf16.msra.mxu0 0
      %282 = vmatprep.subr.bf16.mxu0 0
      %283 = vmatpush1.bf16.msra.mxu0 0
      %284 = vmatprep.subr.bf16.mxu0 0
      %285 = vmatpush1.bf16.msra.mxu0 0
      %286 = vmatprep.subr.bf16.mxu0 0
      %287 = vmatpush1.bf16.msra.mxu0 0
      %288 = vmatprep.subr.bf16.mxu0 0
      %289 = vmatpush1.bf16.msra.mxu0 0
      %290 = vmatprep.subr.bf16.mxu0 0
      %291 = vmatpush1.bf16.msra.mxu0 0
      %292 = vmatprep.subr.bf16.mxu0 0
      %293 = vmatpush1.bf16.msra.mxu0 0
      %294 = vmatprep.subr.bf16.mxu0 0
      %295 = vmatpush1.bf16.msra.mxu0 0
      %296 = vmatprep.mubr.bf16.mxu0 0
      %297 = vmatmul.mubr.bf16.gmra.mrb[0].mxu0 %v252
      %v298 = vpop.f32.mrb[0].mxu0
      %v299 = vadd.f32 %v221, %v298
      %v300 = vpop.f32.mrb[0].mxu0
      %v301 = vadd.f32 %v221, %v300
      %v302 = vpop.f32.mrb[0].mxu0
      %v303 = vadd.f32 %v226, %v302
      %v304 = vpop.f32.mrb[0].mxu0
      %v305 = vadd.f32 %v226, %v304
      %306 = vmatprep.mubr.bf16.mxu0 0
      %307 = vmatmul.mubr.bf16.gmra.mrb[0].mxu0 %v255
      %v308 = vpop.f32.mrb[0].mxu0
      %v309 = vadd.f32 %v231, %v308
      %v310 = vpop.f32.mrb[0].mxu0
      %v311 = vadd.f32 %v231, %v310
      %v312 = vpop.f32.mrb[0].mxu0
      %v313 = vpop.f32.mrb[0].mxu0
      %314 = vdwg.mxu0
      %v315 = vmax.f32 %v299, 0.0
      %v316 = vmax.f32 %v301, 0.0
      %v317 = vmax.f32 %v303, 0.0
      %v318 = vmax.f32 %v305, 0.0
      %v319 = vmax.f32 %v309, 0.0
      %v320 = vmax.f32 %v311, 0.0
      %321 = vst [vmem:[%s208] sm:$0xff] %v315
      %322 = vst [vmem:[%s208 + $0x8] sm:$0xff] %v316
      %323 = vst [vmem:[%s208 + $0x10] sm:$0xff] %v317
      %324 = vst [vmem:[%s208 + $0x18] sm:$0xff] %v318
      %325 = vst [vmem:[%s208 + $0x20] sm:$0xff] %v319
      %326 = vst [vmem:[%s208 + $0x28] sm:$0xff] %v320
      %s327 = smul.u32 2, %s19
      %p328 = scmp.lt.s32.totalorder %s18, 1
      %s329 = scalar_select %p328, %s18, 1
      %p330 = scmp.lt.s32.totalorder %s327, 1
      %s331 = scalar_select %p330, %s327, 1
      %s332 = smul.addr %s329, 6
      %s333 = sadd.s32 %s331, %s332
      %s334 = smul.addr %s333, 8
      %s335 = scalar_lea.vmem %s3, %s334
      // Predicated region
      $region33: #{inception_forward.4} parent=31 // pred_check
        %p336 = pneg %p116
      $region34: #{inception_forward.4} parent=31 // pred_check_branch
        %338 = sbr.rel (%p336) target = $region36
      $region35: #{inception_forward.4} parent=31 // pred_region
        %s339 = smul.u32 2, %s19
      $region36: #{inception_forward.4} parent=31 // pred_fallthru
        _
    $region32: #{inception_forward.4} parent=5 // pred_fallthru
      _
    %p340 = scmp.le.s32.totalorder 2, %s9
    // Predicated region
    $region37: #{inception_forward.4} parent=5 // pred_check
      %p341 = pneg %p340
    $region38: #{inception_forward.4} parent=5 // pred_check_branch
      %343 = sbr.rel (%p341) target = $region40
    $region39: #{inception_forward.4} parent=5 // pred_region
      %s344 = ssub.s32 %s9, 2
      // Predicated region
      $region41: #{inception_forward.4} parent=39 // pred_check
        %p345 = pneg %p122
      $region42: #{inception_forward.4} parent=39 // pred_check_branch
        %347 = sbr.rel (%p345) target = $region44
      $region43: #{inception_forward.4} parent=39 // pred_region
        %s348 = smul.u32 2, %s21
        %p349 = scmp.lt.s32.totalorder %s20, 1
        %s350 = scalar_select %p349, %s20, 1
        %p351 = scmp.lt.s32.totalorder %s348, 1
        %s352 = scalar_select %p351, %s348, 1
        %s353 = smul.addr %s350, 6
        %s354 = sadd.s32 %s352, %s353
        %s355 = smul.addr %s354, 8
        %s356 = scalar_lea.vmem %s3, %s355
      $region44: #{inception_forward.4} parent=39 // pred_fallthru
        _
    $region40: #{inception_forward.4} parent=5 // pred_fallthru
      _
  $region6: #{inception_forward.4} parent=0 // loop_footer
    %s13 = sadd.s32 1, %s9
  $region7: #{inception_forward.4} parent=0 // loop_footer_branch
    %8 = sbr.rel target = $region3
  $region8: #{inception_forward.4} parent=0 // loop_exit
    _

// kernel: inception_forward.6
$region0: #{inception_forward.6}
  #allocation0 [shape = 'u32[]', space=smem, size = 0x4, offset = 0x4, fixed_abs, tag = 'smem constant byte address 0x4 - core index']
  #allocation1 [shape = 'u32[144,128]{1,0:T(1,128)}', space=vmem, size = 0x12000, scoped, tag = 'internal scratch']
  %s0 = inlined_call_operand.vmem [shape: bf16[2,8,324], index: 0, kind: input, shape index: {}]
  %s1 = inlined_call_operand.vmem [shape: bf16[5,8,8], index: 1, kind: input, shape index: {}]
  %s2 = inlined_call_operand.vmem [shape: f32[8,1], index: 2, kind: input, shape index: {}]
  %s3 = inlined_call_operand.vmem [shape: f32[2,8,320], index: 3, kind: output, shape index: {}]
  %s4 = sld [smem:[#allocation0]]
  $region45: #{inception_forward.6} parent=0
    _
  %s6 = ssub.s32 1, %s4
  %s7 = scalar_select 0, %s6, %s4
  loop: start=0, step=1, limit=4
  $region2: #{inception_forward.6} parent=0 // loop_pre_header
    _
  $region3: #{inception_forward.6} parent=0 // loop_header
    %s9 = sphi 0, %s13
    %p10 = scmp.ge.s32.totalorder %s9, 4
    %s19 = sphi 0, %s21
    %s22 = sphi 0, %s19
    %s23 = sphi 0, %s22
    %s39 = sphi 0, %s23
    %s43 = sphi 0, %s43
    %s45 = sphi 0, %s43
    %s46 = sphi 0, %s45
    %s60 = sphi 0, %s46
    %s64 = sphi 0, %s64
    %s66 = sphi 0, %s64
    %s67 = sphi 0, %s66
    %s81 = sphi 0, %s67
    %s87 = sphi 0, %s89
    %s90 = sphi 0, %s87
    %s91 = sphi 0, %s90
    %s107 = sphi 0, %s91
  $region4: #{inception_forward.6} parent=0 // loop_header_branch
    %12 = sbr.rel (%p10) target = $region8
  $region5: #{inception_forward.6} parent=0 // loop_body
    %s14 = ssub.s32 %s9, 1
    %s15 = ssub.s32 %s9, 2
    %s16 = sadd.s32 %s9, 1
    %s17 = ssub.s32 %s9, %s16
    %p18 = scmp.eq.s32.totalorder %s17, 0
    %s20 = sadd.s32 %s19, 1
    %s21 = scalar_select %p18, %s19, %s20
    %p24 = pneg %p18
    %p25 = scmp.eq.s32.totalorder %s9, 1
    %p26 = por %p24, %p25
    %p27 = scmp.ne.s32.totalorder %s19, %s22
    %p28 = scmp.eq.s32.totalorder %s9, 0
    %p29 = por %p27, %p28
    %p30 = scmp.ne.s32.totalorder %s19, %s22
    %p31 = scmp.eq.s32.totalorder %s14, 1
    %p32 = por %p30, %p31
    %p33 = scmp.ne.s32.totalorder %s22, %s23
    %p34 = scmp.eq.s32.totalorder %s14, 0
    %p35 = por %p33, %p34
    %p36 = scmp.ne.s32.totalorder %s22, %s23
    %p37 = scmp.eq.s32.totalorder %s15, 1
    %p38 = por %p36, %p37
    %p40 = scmp.ne.s32.totalorder %s23, %s39
    %p41 = scmp.eq.s32.totalorder %s15, 0
    %p42 = por %p40, %p41
    %s44 = sadd.s32 %s43, 1
    %p47 = scmp.eq.s32.totalorder %s9, 1
    %p48 = scmp.ne.s32.totalorder %s43, %s45
    %p49 = scmp.eq.s32.totalorder %s9, 0
    %p50 = por %p48, %p49
    %p51 = scmp.ne.s32.totalorder %s43, %s45
    %p52 = scmp.eq.s32.totalorder %s14, 1
    %p53 = por %p51, %p52
    %p54 = scmp.ne.s32.totalorder %s45, %s46
    %p55 = scmp.eq.s32.totalorder %s14, 0
    %p56 = por %p54, %p55
    %p57 = scmp.ne.s32.totalorder %s45, %s46
    %p58 = scmp.eq.s32.totalorder %s15, 1
    %p59 = por %p57, %p58
    %p61 = scmp.ne.s32.totalorder %s46, %s60
    %p62 = scmp.eq.s32.totalorder %s15, 0
    %p63 = por %p61, %p62
    %s65 = sadd.s32 %s64, 1
    %p68 = scmp.eq.s32.totalorder %s9, 1
    %p69 = scmp.ne.s32.totalorder %s64, %s66
    %p70 = scmp.eq.s32.totalorder %s9, 0
    %p71 = por %p69, %p70
    %p72 = scmp.ne.s32.totalorder %s64, %s66
    %p73 = scmp.eq.s32.totalorder %s14, 1
    %p74 = por %p72, %p73
    %p75 = scmp.ne.s32.totalorder %s66, %s67
    %p76 = scmp.eq.s32.totalorder %s14, 0
    %p77 = por %p75, %p76
    %p78 = scmp.ne.s32.totalorder %s66, %s67
    %p79 = scmp.eq.s32.totalorder %s15, 1
    %p80 = por %p78, %p79
    %p82 = scmp.ne.s32.totalorder %s67, %s81
    %p83 = scmp.eq.s32.totalorder %s15, 0
    %p84 = por %p82, %p83
    %s85 = ssub.s32 %s9, %s16
    %p86 = scmp.eq.s32.totalorder %s85, 0
    %s88 = sadd.s32 %s87, 1
    %s89 = scalar_select %p86, %s87, %s88
    %p92 = pneg %p86
    %p93 = scmp.eq.s32.totalorder %s9, 1
    %p94 = por %p92, %p93
    %p95 = scmp.ne.s32.totalorder %s87, %s90
    %p96 = scmp.eq.s32.totalorder %s9, 0
    %p97 = por %p95, %p96
    %p98 = scmp.ne.s32.totalorder %s87, %s90
    %p99 = scmp.eq.s32.totalorder %s14, 1
    %p100 = por %p98, %p99
    %p101 = scmp.ne.s32.totalorder %s90, %s91
    %p102 = scmp.eq.s32.totalorder %s14, 0
    %p103 = por %p101, %p102
    %p104 = scmp.ne.s32.totalorder %s90, %s91
    %p105 = scmp.eq.s32.totalorder %s15, 1
    %p106 = por %p104, %p105
    %p108 = scmp.ne.s32.totalorder %s91, %s107
    %p109 = scmp.eq.s32.totalorder %s15, 0
    %p110 = por %p108, %p109
    %p111 = scmp.le.s32.totalorder 1, %s9
    %p112 = scmp.lt.s32.totalorder %s9, 3
    %p113 = pnand %p111, %p112
    %p114 = pneg %p113
    // Predicated region
    $region9: #{inception_forward.6} parent=5 // pred_check
      _
    $region10: #{inception_forward.6} parent=5 // pred_check_branch
      %116 = sbr.rel (%p113) target = $region12
    $region11: #{inception_forward.6} parent=5 // pred_region
      %s117 = ssub.s32 %s9, 1
      // Predicated region
      $region13: #{inception_forward.6} parent=11 // pred_check
        %p118 = pneg %p56
      $region14: #{inception_forward.6} parent=11 // pred_check_branch
        %120 = sbr.rel (%p118) target = $region16
      $region15: #{inception_forward.6} parent=11 // pred_region
        _
      $region16: #{inception_forward.6} parent=11 // pred_fallthru
        _
      // Predicated region
      $region17: #{inception_forward.6} parent=11 // pred_check
        %p121 = pneg %p77
      $region18: #{inception_forward.6} parent=11 // pred_check_branch
        %123 = sbr.rel (%p121) target = $region20
      $region19: #{inception_forward.6} parent=11 // pred_region
        _
      $region20: #{inception_forward.6} parent=11 // pred_fallthru
        _
    $region12: #{inception_forward.6} parent=5 // pred_fallthru
      _
    %p124 = scmp.lt.s32.totalorder %s9, 2
    // Predicated region
    $region21: #{inception_forward.6} parent=5 // pred_check
      %p125 = pneg %p124
    $region22: #{inception_forward.6} parent=5 // pred_check_branch
      %127 = sbr.rel (%p125) target = $region24
    $region23: #{inception_forward.6} parent=5 // pred_region
      // Predicated region
      $region25: #{inception_forward.6} parent=23 // pred_check
        %p128 = pneg %p29
      $region26: #{inception_forward.6} parent=23 // pred_check_branch
        %130 = sbr.rel (%p128) target = $region28
      $region27: #{inception_forward.6} parent=23 // pred_region
        %p131 = scmp.lt.s32.totalorder %s9, 1
        %s132 = scalar_select %p131, %s9, 1
        %s133 = smul.addr %s132, 3
        %s134 = smul.addr %s133, 4
        %s135 = scalar_lea.vmem %s0, %s134
      $region28: #{inception_forward.6} parent=23 // pred_fallthru
        _
    $region24: #{inception_forward.6} parent=5 // pred_fallthru
      _
    %p136 = scmp.le.s32.totalorder 1, %s9
    %p137 = scmp.lt.s32.totalorder %s9, 3
    %p138 = pnand %p136, %p137
    %p139 = pneg %p138
    // Predicated region
    $region29: #{inception_forward.6} parent=5 // pred_check
      _
    $region30: #{inception_forward.6} parent=5 // pred_check_branch
      %141 = sbr.rel (%p138) target = $region32
    $region31: #{inception_forward.6} parent=5 // pred_region
      %s142 = ssub.s32 %s9, 1
      %p143 = scmp.lt.s32.totalorder %s14, 1
      %s144 = scalar_select %p143, %s14, 1
      %s145 = smul.addr %s144, 3
      %s146 = smul.addr %s145, 4
      %s147 = scalar_lea.vmem %s0, %s146
      %p148 = pneg %p35
      %p149 = pneg %p32
      %p150 = pneg %p56
      %p151 = pneg %p53
      %p152 = pneg %p77
      %p153 = pneg %p74
      %p154 = pneg %p103
      %p155 = pneg %p100
      %p156 = scmp.lt.s32.totalorder %s14, 1
      %s157 = scalar_select %p156, %s14, 1
      %s158 = smul.addr %s157, 3
      %s159 = smul.addr %s158, 8
      %s160 = scalar_lea.vmem %s3, %s159
      %p161 = scmp.lt.s32.totalorder %s14, 1
      %s162 = scalar_select %p161, %s14, 1
      %s163 = smul.addr %s162, 3
      %s164 = smul.addr %s163, 4
      %s165 = scalar_lea.vmem %s0, %s164
      %p166 = scmp.lt.s32.totalorder %s14, 1
      %s167 = scalar_select %p166, %s14, 1
      %s168 = smul.addr %s167, 3
      %s169 = smul.addr %s168, 8
      %s170 = scalar_lea.vmem %s3, %s169
      %v172 = vld [vmem:[%s1] sm:$0xf]
      %v173 = vld [vmem:[%s165] sm:$0xff]
      %v174 = vld [vmem:[%s165 + $0x8] sm:$0xf]
      %s175 = scalar_lea.vmem %s1, 4
      %v176 = vld [vmem:[%s175] sm:$0xf]
      %v179 = vunpack.c.l.b16 %v173
      %v180 = vunpack.c.h.b16 %v173
      %v181 = vunpack.c.l.b16 %v174
      %v182 = vpack.c.b16 %v179, %v179
      %v183 = vpack.c.b16 %v180, %v180
      %v184 = vpack.c.b16 %v181, %v181
      %185 = vrot.lane.b32.xlu0 %v182, 127
      %v186 = vpop.permute.xlu0 %185
      %187 = vrot.lane.b32.xlu0 %v183, 127
      %v188 = vpop.permute.xlu0 %187
      %189 = vrot.lane.b32.xlu0 %v184, 127
      %v190 = vpop.permute.xlu0 %189
      %vm191 = vcmask 1039360
      %v192 = vsel %vm191, %v186, %v188
      %v193 = vsel %vm191, %v188, %v190
      %vm194 = vcmask 64512
      %v196 = vsel %vm194, %v176, 0
      %vm198 = vcmask 1043456
      %v200 = vsel %vm198, %v192, 0
      %v203 = vsel %vm198, %v193, 0
      %v206 = vsel %vm198, %v190, 0
      %208 = vmatprep.subr.bf16.mxu0 %v203
      %209 = vmatpush1.bf16.msra.mxu0 %v200
      %210 = vmatprep.subr.bf16.mxu0 0
      %211 = vmatpush1.bf16.msra.mxu0 0
      %212 = vmatprep.subr.bf16.mxu0 0
      %213 = vmatpush1.bf16.msra.mxu0 0
      %214 = vmatprep.subr.bf16.mxu0 0
      %215 = vmatpush1.bf16.msra.mxu0 0
      %216 = vmatprep.subr.bf16.mxu0 0
      %217 = vmatpush1.bf16.msra.mxu0 0
      %218 = vmatprep.subr.bf16.mxu0 0
      %219 = vmatpush1.bf16.msra.mxu0 0
      %220 = vmatprep.subr.bf16.mxu0 0
      %221 = vmatpush1.bf16.msra.mxu0 0
      %222 = vmatprep.subr.bf16.mxu0 0
      %223 = vmatpush1.bf16.msra.mxu0 0
      %224 = vmatprep.subr.bf16.mxu0 0
      %225 = vmatpush1.bf16.msra.mxu0 0
      %226 = vmatprep.subr.bf16.mxu0 0
      %227 = vmatpush1.bf16.msra.mxu0 0
      %228 = vmatprep.subr.bf16.mxu0 0
      %229 = vmatpush1.bf16.msra.mxu0 0
      %230 = vmatprep.subr.bf16.mxu0 0
      %231 = vmatpush1.bf16.msra.mxu0 0
      %232 = vmatprep.subr.bf16.mxu0 0
      %233 = vmatpush1.bf16.msra.mxu0 0
      %234 = vmatprep.subr.bf16.mxu0 0
      %235 = vmatpush1.bf16.msra.mxu0 0
      %236 = vmatprep.subr.bf16.mxu0 0
      %237 = vmatpush1.bf16.msra.mxu0 0
      %238 = vmatprep.subr.bf16.mxu0 0
      %239 = vmatpush1.bf16.msra.mxu0 0
      %240 = vmatprep.mubr.bf16.mxu0 0
      %241 = vmatmul.mubr.bf16.gmra.mrb[0].mxu0 %v196
      %v242 = vpop.f32.mrb[0].mxu0
      %v243 = vadd.f32 0.0, %v242
      %v244 = vpop.f32.mrb[0].mxu0
      %v245 = vadd.f32 0.0, %v244
      %v246 = vpop.f32.mrb[0].mxu0
      %v247 = vpop.f32.mrb[0].mxu0
      %248 = vdwg.mxu0
      %249 = vmatprep.subr.bf16.mxu0 0
      %250 = vmatpush1.bf16.msra.mxu0 %v206
      %251 = vmatprep.subr.bf16.mxu0 0
      %252 = vmatpush1.bf16.msra.mxu0 0
      %253 = vmatprep.subr.bf16.mxu0 0
      %254 = vmatpush1.bf16.msra.mxu0 0
      %255 = vmatprep.subr.bf16.mxu0 0
      %256 = vmatpush1.bf16.msra.mxu0 0
      %257 = vmatprep.subr.bf16.mxu0 0
      %258 = vmatpush1.bf16.msra.mxu0 0
      %259 = vmatprep.subr.bf16.mxu0 0
      %260 = vmatpush1.bf16.msra.mxu0 0
      %261 = vmatprep.subr.bf16.mxu0 0
      %262 = vmatpush1.bf16.msra.mxu0 0
      %263 = vmatprep.subr.bf16.mxu0 0
      %264 = vmatpush1.bf16.msra.mxu0 0
      %265 = vmatprep.subr.bf16.mxu0 0
      %266 = vmatpush1.bf16.msra.mxu0 0
      %267 = vmatprep.subr.bf16.mxu0 0
      %268 = vmatpush1.bf16.msra.mxu0 0
      %269 = vmatprep.subr.bf16.mxu0 0
      %270 = vmatpush1.bf16.msra.mxu0 0
      %271 = vmatprep.subr.bf16.mxu0 0
      %272 = vmatpush1.bf16.msra.mxu0 0
      %273 = vmatprep.subr.bf16.mxu0 0
      %274 = vmatpush1.bf16.msra.mxu0 0
      %275 = vmatprep.subr.bf16.mxu0 0
      %276 = vmatpush1.bf16.msra.mxu0 0
      %277 = vmatprep.subr.bf16.mxu0 0
      %278 = vmatpush1.bf16.msra.mxu0 0
      %279 = vmatprep.subr.bf16.mxu0 0
      %280 = vmatpush1.bf16.msra.mxu0 0
      %281 = vmatprep.mubr.bf16.mxu0 0
      %282 = vmatmul.mubr.bf16.gmra.mrb[0].mxu0 %v196
      %v283 = vpop.f32.mrb[0].mxu0
      %v284 = vadd.f32 0.0, %v283
      %v285 = vpop.f32.mrb[0].mxu0
      %v286 = vpop.f32.mrb[0].mxu0
      %v287 = vpop.f32.mrb[0].mxu0
      %288 = vdwg.mxu0
      %v290 = vsel %vm194, %v172, 0
      %v293 = vsel %vm198, %v182, 0
      %v296 = vsel %vm198, %v183, 0
      %v299 = vsel %vm198, %v184, 0
      %301 = vmatprep.subr.bf16.mxu0 %v296
      %302 = vmatpush1.bf16.msra.mxu0 %v293
      %303 = vmatprep.subr.bf16.mxu0 0
      %304 = vmatpush1.bf16.msra.mxu0 0
      %305 = vmatprep.subr.bf16.mxu0 0
      %306 = vmatpush1.bf16.msra.mxu0 0
      %307 = vmatprep.subr.bf16.mxu0 0
      %308 = vmatpush1.bf16.msra.mxu0 0
      %309 = vmatprep.subr.bf16.mxu0 0
      %310 = vmatpush1.bf16.msra.mxu0 0
      %311 = vmatprep.subr.bf16.mxu0 0
      %312 = vmatpush1.bf16.msra.mxu0 0
      %313 = vmatprep.subr.bf16.mxu0 0
      %314 = vmatpush1.bf16.msra.mxu0 0
      %315 = vmatprep.subr.bf16.mxu0 0
      %316 = vmatpush1.bf16.msra.mxu0 0
      %317 = vmatprep.subr.bf16.mxu0 0
      %318 = vmatpush1.bf16.msra.mxu0 0
      %319 = vmatprep.subr.bf16.mxu0 0
      %320 = vmatpush1.bf16.msra.mxu0 0
      %321 = vmatprep.subr.bf16.mxu0 0
      %322 = vmatpush1.bf16.msra.mxu0 0
      %323 = vmatprep.subr.bf16.mxu0 0
      %324 = vmatpush1.bf16.msra.mxu0 0
      %325 = vmatprep.subr.bf16.mxu0 0
      %326 = vmatpush1.bf16.msra.mxu0 0
      %327 = vmatprep.subr.bf16.mxu0 0
      %328 = vmatpush1.bf16.msra.mxu0 0
      %329 = vmatprep.subr.bf16.mxu0 0
      %330 = vmatpush1.bf16.msra.mxu0 0
      %331 = vmatprep.subr.bf16.mxu0 0
      %332 = vmatpush1.bf16.msra.mxu0 0
      %333 = vmatprep.mubr.bf16.mxu0 0
      %334 = vmatmul.mubr.bf16.gmra.mrb[0].mxu0 %v290
      %v335 = vpop.f32.mrb[0].mxu0
      %v336 = vadd.f32 %v243, %v335
      %v337 = vpop.f32.mrb[0].mxu0
      %v338 = vadd.f32 %v245, %v337
      %v339 = vpop.f32.mrb[0].mxu0
      %v340 = vpop.f32.mrb[0].mxu0
      %341 = vdwg.mxu0
      %342 = vmatprep.subr.bf16.mxu0 0
      %343 = vmatpush1.bf16.msra.mxu0 %v299
      %344 = vmatprep.subr.bf16.mxu0 0
      %345 = vmatpush1.bf16.msra.mxu0 0
      %346 = vmatprep.subr.bf16.mxu0 0
      %347 = vmatpush1.bf16.msra.mxu0 0
      %348 = vmatprep.subr.bf16.mxu0 0
      %349 = vmatpush1.bf16.msra.mxu0 0
      %350 = vmatprep.subr.bf16.mxu0 0
      %351 = vmatpush1.bf16.msra.mxu0 0
      %352 = vmatprep.subr.bf16.mxu0 0
      %353 = vmatpush1.bf16.msra.mxu0 0
      %354 = vmatprep.subr.bf16.mxu0 0
      %355 = vmatpush1.bf16.msra.mxu0 0
      %356 = vmatprep.subr.bf16.mxu0 0
      %357 = vmatpush1.bf16.msra.mxu0 0
      %358 = vmatprep.subr.bf16.mxu0 0
      %359 = vmatpush1.bf16.msra.mxu0 0
      %360 = vmatprep.subr.bf16.mxu0 0
      %361 = vmatpush1.bf16.msra.mxu0 0
      %362 = vmatprep.subr.bf16.mxu0 0
      %363 = vmatpush1.bf16.msra.mxu0 0
      %364 = vmatprep.subr.bf16.mxu0 0
      %365 = vmatpush1.bf16.msra.mxu0 0
      %366 = vmatprep.subr.bf16.mxu0 0
      %367 = vmatpush1.bf16.msra.mxu0 0
      %368 = vmatprep.subr.bf16.mxu0 0
      %369 = vmatpush1.bf16.msra.mxu0 0
      %370 = vmatprep.subr.bf16.mxu0 0
      %371 = vmatpush1.bf16.msra.mxu0 0
      %372 = vmatprep.subr.bf16.mxu0 0
      %373 = vmatpush1.bf16.msra.mxu0 0
      %374 = vmatprep.mubr.bf16.mxu0 0
      %375 = vmatmul.mubr.bf16.gmra.mrb[0].mxu0 %v290
      %v376 = vpop.f32.mrb[0].mxu0
      %v377 = vadd.f32 %v284, %v376
      %v378 = vpop.f32.mrb[0].mxu0
      %v379 = vpop.f32.mrb[0].mxu0
      %v380 = vpop.f32.mrb[0].mxu0
      %381 = vdwg.mxu0
      %s382 = scalar_lea.vmem %s1, 8
      %v383 = vld [vmem:[%s382] sm:$0xf]
      %384 = vrot.lane.b32.xlu0 %v182, 126
      %v385 = vpop.permute.xlu0 %384
      %386 = vrot.lane.b32.xlu0 %v183, 126
      %v387 = vpop.permute.xlu0 %386
      %388 = vrot.lane.b32.xlu0 %v184, 126
      %v389 = vpop.permute.xlu0 %388
      %vm390 = vcmask 1031168
      %v391 = vsel %vm390, %v385, %v387
      %v392 = vsel %vm390, %v387, %v389
      %v394 = vsel %vm194, %v383, 0
      %v397 = vsel %vm198, %v391, 0
      %v400 = vsel %vm198, %v392, 0
      %v403 = vsel %vm198, %v389, 0
      %405 = vmatprep.subr.bf16.mxu0 %v400
      %406 = vmatpush1.bf16.msra.mxu0 %v397
      %407 = vmatprep.subr.bf16.mxu0 0
      %408 = vmatpush1.bf16.msra.mxu0 0
      %409 = vmatprep.subr.bf16.mxu0 0
      %410 = vmatpush1.bf16.msra.mxu0 0
      %411 = vmatprep.subr.bf16.mxu0 0
      %412 = vmatpush1.bf16.msra.mxu0 0
      %413 = vmatprep.subr.bf16.mxu0 0
      %414 = vmatpush1.bf16.msra.mxu0 0
      %415 = vmatprep.subr.bf16.mxu0 0
      %416 = vmatpush1.bf16.msra.mxu0 0
      %417 = vmatprep.subr.bf16.mxu0 0
      %418 = vmatpush1.bf16.msra.mxu0 0
      %419 = vmatprep.subr.bf16.mxu0 0
      %420 = vmatpush1.bf16.msra.mxu0 0
      %421 = vmatprep.subr.bf16.mxu0 0
      %422 = vmatpush1.bf16.msra.mxu0 0
      %423 = vmatprep.subr.bf16.mxu0 0
      %424 = vmatpush1.bf16.msra.mxu0 0
      %425 = vmatprep.subr.bf16.mxu0 0
      %426 = vmatpush1.bf16.msra.mxu0 0
      %427 = vmatprep.subr.bf16.mxu0 0
      %428 = vmatpush1.bf16.msra.mxu0 0
      %429 = vmatprep.subr.bf16.mxu0 0
      %430 = vmatpush1.bf16.msra.mxu0 0
      %431 = vmatprep.subr.bf16.mxu0 0
      %432 = vmatpush1.bf16.msra.mxu0 0
      %433 = vmatprep.subr.bf16.mxu0 0
      %434 = vmatpush1.bf16.msra.mxu0 0
      %435 = vmatprep.subr.bf16.mxu0 0
      %436 = vmatpush1.bf16.msra.mxu0 0
      %437 = vmatprep.mubr.bf16.mxu0 0
      %438 = vmatmul.mubr.bf16.gmra.mrb[0].mxu0 %v394
      %v439 = vpop.f32.mrb[0].mxu0
      %v440 = vadd.f32 0.0, %v439
      %v441 = vpop.f32.mrb[0].mxu0
      %v442 = vadd.f32 0.0, %v441
      %v443 = vpop.f32.mrb[0].mxu0
      %v444 = vpop.f32.mrb[0].mxu0
      %445 = vdwg.mxu0
      %446 = vmatprep.subr.bf16.mxu0 0
      %447 = vmatpush1.bf16.msra.mxu0 %v403
      %448 = vmatprep.subr.bf16.mxu0 0
      %449 = vmatpush1.bf16.msra.mxu0 0
      %450 = vmatprep.subr.bf16.mxu0 0
      %451 = vmatpush1.bf16.msra.mxu0 0
      %452 = vmatprep.subr.bf16.mxu0 0
      %453 = vmatpush1.bf16.msra.mxu0 0
      %454 = vmatprep.subr.bf16.mxu0 0
      %455 = vmatpush1.bf16.msra.mxu0 0
      %456 = vmatprep.subr.bf16.mxu0 0
      %457 = vmatpush1.bf16.msra.mxu0 0
      %458 = vmatprep.subr.bf16.mxu0 0
      %459 = vmatpush1.bf16.msra.mxu0 0
      %460 = vmatprep.subr.bf16.mxu0 0
      %461 = vmatpush1.bf16.msra.mxu0 0
      %462 = vmatprep.subr.bf16.mxu0 0
      %463 = vmatpush1.bf16.msra.mxu0 0
      %464 = vmatprep.subr.bf16.mxu0 0
      %465 = vmatpush1.bf16.msra.mxu0 0
      %466 = vmatprep.subr.bf16.mxu0 0
      %467 = vmatpush1.bf16.msra.mxu0 0
      %468 = vmatprep.subr.bf16.mxu0 0
      %469 = vmatpush1.bf16.msra.mxu0 0
      %470 = vmatprep.subr.bf16.mxu0 0
      %471 = vmatpush1.bf16.msra.mxu0 0
      %472 = vmatprep.subr.bf16.mxu0 0
      %473 = vmatpush1.bf16.msra.mxu0 0
      %474 = vmatprep.subr.bf16.mxu0 0
      %475 = vmatpush1.bf16.msra.mxu0 0
      %476 = vmatprep.subr.bf16.mxu0 0
      %477 = vmatpush1.bf16.msra.mxu0 0
      %478 = vmatprep.mubr.bf16.mxu0 0
      %479 = vmatmul.mubr.bf16.gmra.mrb[0].mxu0 %v394
      %v480 = vpop.f32.mrb[0].mxu0
      %v481 = vadd.f32 0.0, %v480
      %v482 = vpop.f32.mrb[0].mxu0
      %v483 = vpop.f32.mrb[0].mxu0
      %v484 = vpop.f32.mrb[0].mxu0
      %485 = vdwg.mxu0
      %v486 = vadd.f32 %v336, %v440
      %v487 = vadd.f32 %v338, %v442
      %v488 = vadd.f32 %v377, %v481
      %s489 = scalar_lea.vmem %s1, 12
      %v490 = vld [vmem:[%s489] sm:$0xf]
      %491 = vrot.lane.b32.xlu0 %v182, 125
      %v492 = vpop.permute.xlu0 %491
      %493 = vrot.lane.b32.xlu0 %v183, 125
      %v494 = vpop.permute.xlu0 %493
      %495 = vrot.lane.b32.xlu0 %v184, 125
      %v496 = vpop.permute.xlu0 %495
      %vm497 = vcmask 1022976
      %v498 = vsel %vm497, %v492, %v494
      %v499 = vsel %vm497, %v494, %v496
      %v501 = vsel %vm194, %v490, 0
      %v504 = vsel %vm198, %v498, 0
      %v507 = vsel %vm198, %v499, 0
      %v510 = vsel %vm198, %v496, 0
      %512 = vmatprep.subr.bf16.mxu0 %v507
      %513 = vmatpush1.bf16.msra.mxu0 %v504
      %514 = vmatprep.subr.bf16.mxu0 0
      %515 = vmatpush1.bf16.msra.mxu0 0
      %516 = vmatprep.subr.bf16.mxu0 0
      %517 = vmatpush1.bf16.msra.mxu0 0
      %518 = vmatprep.subr.bf16.mxu0 0
      %519 = vmatpush1.bf16.msra.mxu0 0
      %520 = vmatprep.subr.bf16.mxu0 0
      %521 = vmatpush1.bf16.msra.mxu0 0
      %522 = vmatprep.subr.bf16.mxu0 0
      %523 = vmatpush1.bf16.msra.mxu0 0
      %524 = vmatprep.subr.bf16.mxu0 0
      %525 = vmatpush1.bf16.msra.mxu0 0
      %526 = vmatprep.subr.bf16.mxu0 0
      %527 = vmatpush1.bf16.msra.mxu0 0
      %528 = vmatprep.subr.bf16.mxu0 0
      %529 = vmatpush1.bf16.msra.mxu0 0
      %530 = vmatprep.subr.bf16.mxu0 0
      %531 = vmatpush1.bf16.msra.mxu0 0
      %532 = vmatprep.subr.bf16.mxu0 0
      %533 = vmatpush1.bf16.msra.mxu0 0
      %534 = vmatprep.subr.bf16.mxu0 0
      %535 = vmatpush1.bf16.msra.mxu0 0
      %536 = vmatprep.subr.bf16.mxu0 0
      %537 = vmatpush1.bf16.msra.mxu0 0
      %538 = vmatprep.subr.bf16.mxu0 0
      %539 = vmatpush1.bf16.msra.mxu0 0
      %540 = vmatprep.subr.bf16.mxu0 0
      %541 = vmatpush1.bf16.msra.mxu0 0
      %542 = vmatprep.subr.bf16.mxu0 0
      %543 = vmatpush1.bf16.msra.mxu0 0
      %544 = vmatprep.mubr.bf16.mxu0 0
      %545 = vmatmul.mubr.bf16.gmra.mrb[0].mxu0 %v501
      %v546 = vpop.f32.mrb[0].mxu0
      %v547 = vadd.f32 0.0, %v546
      %v548 = vpop.f32.mrb[0].mxu0
      %v549 = vadd.f32 0.0, %v548
      %v550 = vpop.f32.mrb[0].mxu0
      %v551 = vpop.f32.mrb[0].mxu0
      %552 = vdwg.mxu0
      %553 = vmatprep.subr.bf16.mxu0 0
      %554 = vmatpush1.bf16.msra.mxu0 %v510
      %555 = vmatprep.subr.bf16.mxu0 0
      %556 = vmatpush1.bf16.msra.mxu0 0
      %557 = vmatprep.subr.bf16.mxu0 0
      %558 = vmatpush1.bf16.msra.mxu0 0
      %559 = vmatprep.subr.bf16.mxu0 0
      %560 = vmatpush1.bf16.msra.mxu0 0
      %561 = vmatprep.subr.bf16.mxu0 0
      %562 = vmatpush1.bf16.msra.mxu0 0
      %563 = vmatprep.subr.bf16.mxu0 0
      %564 = vmatpush1.bf16.msra.mxu0 0
      %565 = vmatprep.subr.bf16.mxu0 0
      %566 = vmatpush1.bf16.msra.mxu0 0
      %567 = vmatprep.subr.bf16.mxu0 0
      %568 = vmatpush1.bf16.msra.mxu0 0
      %569 = vmatprep.subr.bf16.mxu0 0
      %570 = vmatpush1.bf16.msra.mxu0 0
      %571 = vmatprep.subr.bf16.mxu0 0
      %572 = vmatpush1.bf16.msra.mxu0 0
      %573 = vmatprep.subr.bf16.mxu0 0
      %574 = vmatpush1.bf16.msra.mxu0 0
      %575 = vmatprep.subr.bf16.mxu0 0
      %576 = vmatpush1.bf16.msra.mxu0 0
      %577 = vmatprep.subr.bf16.mxu0 0
      %578 = vmatpush1.bf16.msra.mxu0 0
      %579 = vmatprep.subr.bf16.mxu0 0
      %580 = vmatpush1.bf16.msra.mxu0 0
      %581 = vmatprep.subr.bf16.mxu0 0
      %582 = vmatpush1.bf16.msra.mxu0 0
      %583 = vmatprep.subr.bf16.mxu0 0
      %584 = vmatpush1.bf16.msra.mxu0 0
      %585 = vmatprep.mubr.bf16.mxu0 0
      %586 = vmatmul.mubr.bf16.gmra.mrb[0].mxu0 %v501
      %v587 = vpop.f32.mrb[0].mxu0
      %v588 = vadd.f32 0.0, %v587
      %v589 = vpop.f32.mrb[0].mxu0
      %v590 = vpop.f32.mrb[0].mxu0
      %v591 = vpop.f32.mrb[0].mxu0
      %592 = vdwg.mxu0
      %v593 = vadd.f32 %v486, %v547
      %v594 = vadd.f32 %v487, %v549
      %v595 = vadd.f32 %v488, %v588
      %s596 = scalar_lea.vmem %s1, 16
      %v597 = vld [vmem:[%s596] sm:$0xf]
      %598 = vrot.lane.b32.xlu0 %v182, 124
      %v599 = vpop.permute.xlu0 %598
      %600 = vrot.lane.b32.xlu0 %v183, 124
      %v601 = vpop.permute.xlu0 %600
      %602 = vrot.lane.b32.xlu0 %v184, 124
      %v603 = vpop.permute.xlu0 %602
      %vm604 = vcmask 1014784
      %v605 = vsel %vm604, %v599, %v601
      %v606 = vsel %vm604, %v601, %v603
      %v608 = vsel %vm194, %v597, 0
      %v611 = vsel %vm198, %v605, 0
      %v614 = vsel %vm198, %v606, 0
      %v617 = vsel %vm198, %v603, 0
      %619 = vmatprep.subr.bf16.mxu0 %v614
      %620 = vmatpush1.bf16.msra.mxu0 %v611
      %621 = vmatprep.subr.bf16.mxu0 0
      %622 = vmatpush1.bf16.msra.mxu0 0
      %623 = vmatprep.subr.bf16.mxu0 0
      %624 = vmatpush1.bf16.msra.mxu0 0
      %625 = vmatprep.subr.bf16.mxu0 0
      %626 = vmatpush1.bf16.msra.mxu0 0
      %627 = vmatprep.subr.bf16.mxu0 0
      %628 = vmatpush1.bf16.msra.mxu0 0
      %629 = vmatprep.subr.bf16.mxu0 0
      %630 = vmatpush1.bf16.msra.mxu0 0
      %631 = vmatprep.subr.bf16.mxu0 0
      %632 = vmatpush1.bf16.msra.mxu0 0
      %633 = vmatprep.subr.bf16.mxu0 0
      %634 = vmatpush1.bf16.msra.mxu0 0
      %635 = vmatprep.subr.bf16.mxu0 0
      %636 = vmatpush1.bf16.msra.mxu0 0
      %637 = vmatprep.subr.bf16.mxu0 0
      %638 = vmatpush1.bf16.msra.mxu0 0
      %639 = vmatprep.subr.bf16.mxu0 0
      %640 = vmatpush1.bf16.msra.mxu0 0
      %641 = vmatprep.subr.bf16.mxu0 0
      %642 = vmatpush1.bf16.msra.mxu0 0
      %643 = vmatprep.subr.bf16.mxu0 0
      %644 = vmatpush1.bf16.msra.mxu0 0
      %645 = vmatprep.subr.bf16.mxu0 0
      %646 = vmatpush1.bf16.msra.mxu0 0
      %647 = vmatprep.subr.bf16.mxu0 0
      %648 = vmatpush1.bf16.msra.mxu0 0
      %649 = vmatprep.subr.bf16.mxu0 0
      %650 = vmatpush1.bf16.msra.mxu0 0
      %651 = vmatprep.mubr.bf16.mxu0 0
      %652 = vmatmul.mubr.bf16.gmra.mrb[0].mxu0 %v608
      %v653 = vpop.f32.mrb[0].mxu0
      %v654 = vadd.f32 0.0, %v653
      %v655 = vpop.f32.mrb[0].mxu0
      %v656 = vadd.f32 0.0, %v655
      %v657 = vpop.f32.mrb[0].mxu0
      %v658 = vpop.f32.mrb[0].mxu0
      %659 = vdwg.mxu0
      %660 = vmatprep.subr.bf16.mxu0 0
      %661 = vmatpush1.bf16.msra.mxu0 %v617
      %662 = vmatprep.subr.bf16.mxu0 0
      %663 = vmatpush1.bf16.msra.mxu0 0
      %664 = vmatprep.subr.bf16.mxu0 0
      %665 = vmatpush1.bf16.msra.mxu0 0
      %666 = vmatprep.subr.bf16.mxu0 0
      %667 = vmatpush1.bf16.msra.mxu0 0
      %668 = vmatprep.subr.bf16.mxu0 0
      %669 = vmatpush1.bf16.msra.mxu0 0
      %670 = vmatprep.subr.bf16.mxu0 0
      %671 = vmatpush1.bf16.msra.mxu0 0
      %672 = vmatprep.subr.bf16.mxu0 0
      %673 = vmatpush1.bf16.msra.mxu0 0
      %674 = vmatprep.subr.bf16.mxu0 0
      %675 = vmatpush1.bf16.msra.mxu0 0
      %676 = vmatprep.subr.bf16.mxu0 0
      %677 = vmatpush1.bf16.msra.mxu0 0
      %678 = vmatprep.subr.bf16.mxu0 0
      %679 = vmatpush1.bf16.msra.mxu0 0
      %680 = vmatprep.subr.bf16.mxu0 0
      %681 = vmatpush1.bf16.msra.mxu0 0
      %682 = vmatprep.subr.bf16.mxu0 0
      %683 = vmatpush1.bf16.msra.mxu0 0
      %684 = vmatprep.subr.bf16.mxu0 0
      %685 = vmatpush1.bf16.msra.mxu0 0
      %686 = vmatprep.subr.bf16.mxu0 0
      %687 = vmatpush1.bf16.msra.mxu0 0
      %688 = vmatprep.subr.bf16.mxu0 0
      %689 = vmatpush1.bf16.msra.mxu0 0
      %690 = vmatprep.subr.bf16.mxu0 0
      %691 = vmatpush1.bf16.msra.mxu0 0
      %692 = vmatprep.mubr.bf16.mxu0 0
      %693 = vmatmul.mubr.bf16.gmra.mrb[0].mxu0 %v608
      %v694 = vpop.f32.mrb[0].mxu0
      %v695 = vadd.f32 0.0, %v694
      %v696 = vpop.f32.mrb[0].mxu0
      %v697 = vpop.f32.mrb[0].mxu0
      %v698 = vpop.f32.mrb[0].mxu0
      %699 = vdwg.mxu0
      %v700 = vadd.f32 %v593, %v654
      %v701 = vadd.f32 %v594, %v656
      %v702 = vadd.f32 %v595, %v695
      %v703 = vld [vmem:[%s2] sm:$0xff]
      %705 = vset.pattern.permute.xlu0 0
      %706 = vperm.xlu0 %705, %v703
      %v707 = vpop.permute.xlu0 %706
      %v709 = vadd.f32 %v700, %v707
      %v710 = vadd.f32 %v701, %v707
      %v711 = vadd.f32 %v702, %v707
      %v712 = vmax.f32 %v709, 0.0
      %v713 = vmax.f32 %v710, 0.0
      %v714 = vmax.f32 %v711, 0.0
      %715 = vst [vmem:[%s170] sm:$0xff] %v712
      %716 = vst [vmem:[%s170 + $0x8] sm:$0xff] %v713
      %vm717 = vcmask 523264
      %718 = vst.msk [vmem:[%s170 + $0x10] sm:$0xff] %vm717, %v714
      %p719 = scmp.lt.s32.totalorder %s14, 1
      %s720 = scalar_select %p719, %s14, 1
      %s721 = smul.addr %s720, 3
      %s722 = smul.addr %s721, 8
      %s723 = scalar_lea.vmem %s3, %s722
      // Predicated region
      $region33: #{inception_forward.6} parent=31 // pred_check
        %p724 = pneg %p100
      $region34: #{inception_forward.6} parent=31 // pred_check_branch
        %726 = sbr.rel (%p724) target = $region36
      $region35: #{inception_forward.6} parent=31 // pred_region
        _
      $region36: #{inception_forward.6} parent=31 // pred_fallthru
        _
    $region32: #{inception_forward.6} parent=5 // pred_fallthru
      _
    %p727 = scmp.le.s32.totalorder 2, %s9
    // Predicated region
    $region37: #{inception_forward.6} parent=5 // pred_check
      %p728 = pneg %p727
    $region38: #{inception_forward.6} parent=5 // pred_check_branch
      %730 = sbr.rel (%p728) target = $region40
    $region39: #{inception_forward.6} parent=5 // pred_region
      %s731 = ssub.s32 %s9, 2
      // Predicated region
      $region41: #{inception_forward.6} parent=39 // pred_check
        %p732 = pneg %p106
      $region42: #{inception_forward.6} parent=39 // pred_check_branch
        %734 = sbr.rel (%p732) target = $region44
      $region43: #{inception_forward.6} parent=39 // pred_region
        %p735 = scmp.lt.s32.totalorder %s15, 1
        %s736 = scalar_select %p735, %s15, 1
        %s737 = smul.addr %s736, 3
        %s738 = smul.addr %s737, 8
        %s739 = scalar_lea.vmem %s3, %s738
      $region44: #{inception_forward.6} parent=39 // pred_fallthru
        _
    $region40: #{inception_forward.6} parent=5 // pred_fallthru
      _
  $region6: #{inception_forward.6} parent=0 // loop_footer
    %s13 = sadd.s32 1, %s9
  $region7: #{inception_forward.6} parent=0 // loop_footer_branch
    %8 = sbr.rel target = $region3
  $region8: #{inception_forward.6} parent=0 // loop_exit
    _

// kernel: inception_forward.5
$region0: #{inception_forward.5}
  #allocation0 [shape = 'u32[]', space=smem, size = 0x4, offset = 0x4, fixed_abs, tag = 'smem constant byte address 0x4 - core index']
  #allocation1 [shape = 'u32[144,128]{1,0:T(1,128)}', space=vmem, size = 0x12000, scoped, tag = 'internal scratch']
  %s0 = inlined_call_operand.vmem [shape: bf16[2,8,290], index: 0, kind: input, shape index: {}]
  %s1 = inlined_call_operand.vmem [shape: bf16[3,8,8], index: 1, kind: input, shape index: {}]
  %s2 = inlined_call_operand.vmem [shape: f32[8,1], index: 2, kind: input, shape index: {}]
  %s3 = inlined_call_operand.vmem [shape: f32[2,8,288], index: 3, kind: output, shape index: {}]
  %s4 = sld [smem:[#allocation0]]
  $region45: #{inception_forward.5} parent=0
    _
  %s6 = ssub.s32 1, %s4
  %s7 = scalar_select 0, %s6, %s4
  loop: start=0, step=1, limit=4
  $region2: #{inception_forward.5} parent=0 // loop_pre_header
    _
  $region3: #{inception_forward.5} parent=0 // loop_header
    %s9 = sphi 0, %s13
    %p10 = scmp.ge.s32.totalorder %s9, 4
    %s19 = sphi 0, %s21
    %s22 = sphi 0, %s19
    %s23 = sphi 0, %s22
    %s39 = sphi 0, %s23
    %s43 = sphi 0, %s43
    %s45 = sphi 0, %s43
    %s46 = sphi 0, %s45
    %s60 = sphi 0, %s46
    %s64 = sphi 0, %s64
    %s66 = sphi 0, %s64
    %s67 = sphi 0, %s66
    %s81 = sphi 0, %s67
    %s87 = sphi 0, %s89
    %s90 = sphi 0, %s87
    %s91 = sphi 0, %s90
    %s107 = sphi 0, %s91
  $region4: #{inception_forward.5} parent=0 // loop_header_branch
    %12 = sbr.rel (%p10) target = $region8
  $region5: #{inception_forward.5} parent=0 // loop_body
    %s14 = ssub.s32 %s9, 1
    %s15 = ssub.s32 %s9, 2
    %s16 = sadd.s32 %s9, 1
    %s17 = ssub.s32 %s9, %s16
    %p18 = scmp.eq.s32.totalorder %s17, 0
    %s20 = sadd.s32 %s19, 1
    %s21 = scalar_select %p18, %s19, %s20
    %p24 = pneg %p18
    %p25 = scmp.eq.s32.totalorder %s9, 1
    %p26 = por %p24, %p25
    %p27 = scmp.ne.s32.totalorder %s19, %s22
    %p28 = scmp.eq.s32.totalorder %s9, 0
    %p29 = por %p27, %p28
    %p30 = scmp.ne.s32.totalorder %s19, %s22
    %p31 = scmp.eq.s32.totalorder %s14, 1
    %p32 = por %p30, %p31
    %p33 = scmp.ne.s32.totalorder %s22, %s23
    %p34 = scmp.eq.s32.totalorder %s14, 0
    %p35 = por %p33, %p34
    %p36 = scmp.ne.s32.totalorder %s22, %s23
    %p37 = scmp.eq.s32.totalorder %s15, 1
    %p38 = por %p36, %p37
    %p40 = scmp.ne.s32.totalorder %s23, %s39
    %p41 = scmp.eq.s32.totalorder %s15, 0
    %p42 = por %p40, %p41
    %s44 = sadd.s32 %s43, 1
    %p47 = scmp.eq.s32.totalorder %s9, 1
    %p48 = scmp.ne.s32.totalorder %s43, %s45
    %p49 = scmp.eq.s32.totalorder %s9, 0
    %p50 = por %p48, %p49
    %p51 = scmp.ne.s32.totalorder %s43, %s45
    %p52 = scmp.eq.s32.totalorder %s14, 1
    %p53 = por %p51, %p52
    %p54 = scmp.ne.s32.totalorder %s45, %s46
    %p55 = scmp.eq.s32.totalorder %s14, 0
    %p56 = por %p54, %p55
    %p57 = scmp.ne.s32.totalorder %s45, %s46
    %p58 = scmp.eq.s32.totalorder %s15, 1
    %p59 = por %p57, %p58
    %p61 = scmp.ne.s32.totalorder %s46, %s60
    %p62 = scmp.eq.s32.totalorder %s15, 0
    %p63 = por %p61, %p62
    %s65 = sadd.s32 %s64, 1
    %p68 = scmp.eq.s32.totalorder %s9, 1
    %p69 = scmp.ne.s32.totalorder %s64, %s66
    %p70 = scmp.eq.s32.totalorder %s9, 0
    %p71 = por %p69, %p70
    %p72 = scmp.ne.s32.totalorder %s64, %s66
    %p73 = scmp.eq.s32.totalorder %s14, 1
    %p74 = por %p72, %p73
    %p75 = scmp.ne.s32.totalorder %s66, %s67
    %p76 = scmp.eq.s32.totalorder %s14, 0
    %p77 = por %p75, %p76
    %p78 = scmp.ne.s32.totalorder %s66, %s67
    %p79 = scmp.eq.s32.totalorder %s15, 1
    %p80 = por %p78, %p79
    %p82 = scmp.ne.s32.totalorder %s67, %s81
    %p83 = scmp.eq.s32.totalorder %s15, 0
    %p84 = por %p82, %p83
    %s85 = ssub.s32 %s9, %s16
    %p86 = scmp.eq.s32.totalorder %s85, 0
    %s88 = sadd.s32 %s87, 1
    %s89 = scalar_select %p86, %s87, %s88
    %p92 = pneg %p86
    %p93 = scmp.eq.s32.totalorder %s9, 1
    %p94 = por %p92, %p93
    %p95 = scmp.ne.s32.totalorder %s87, %s90
    %p96 = scmp.eq.s32.totalorder %s9, 0
    %p97 = por %p95, %p96
    %p98 = scmp.ne.s32.totalorder %s87, %s90
    %p99 = scmp.eq.s32.totalorder %s14, 1
    %p100 = por %p98, %p99
    %p101 = scmp.ne.s32.totalorder %s90, %s91
    %p102 = scmp.eq.s32.totalorder %s14, 0
    %p103 = por %p101, %p102
    %p104 = scmp.ne.s32.totalorder %s90, %s91
    %p105 = scmp.eq.s32.totalorder %s15, 1
    %p106 = por %p104, %p105
    %p108 = scmp.ne.s32.totalorder %s91, %s107
    %p109 = scmp.eq.s32.totalorder %s15, 0
    %p110 = por %p108, %p109
    %p111 = scmp.le.s32.totalorder 1, %s9
    %p112 = scmp.lt.s32.totalorder %s9, 3
    %p113 = pnand %p111, %p112
    %p114 = pneg %p113
    // Predicated region
    $region9: #{inception_forward.5} parent=5 // pred_check
      _
    $region10: #{inception_forward.5} parent=5 // pred_check_branch
      %116 = sbr.rel (%p113) target = $region12
    $region11: #{inception_forward.5} parent=5 // pred_region
      %s117 = ssub.s32 %s9, 1
      // Predicated region
      $region13: #{inception_forward.5} parent=11 // pred_check
        %p118 = pneg %p56
      $region14: #{inception_forward.5} parent=11 // pred_check_branch
        %120 = sbr.rel (%p118) target = $region16
      $region15: #{inception_forward.5} parent=11 // pred_region
        _
      $region16: #{inception_forward.5} parent=11 // pred_fallthru
        _
      // Predicated region
      $region17: #{inception_forward.5} parent=11 // pred_check
        %p121 = pneg %p77
      $region18: #{inception_forward.5} parent=11 // pred_check_branch
        %123 = sbr.rel (%p121) target = $region20
      $region19: #{inception_forward.5} parent=11 // pred_region
        _
      $region20: #{inception_forward.5} parent=11 // pred_fallthru
        _
    $region12: #{inception_forward.5} parent=5 // pred_fallthru
      _
    %p124 = scmp.lt.s32.totalorder %s9, 2
    // Predicated region
    $region21: #{inception_forward.5} parent=5 // pred_check
      %p125 = pneg %p124
    $region22: #{inception_forward.5} parent=5 // pred_check_branch
      %127 = sbr.rel (%p125) target = $region24
    $region23: #{inception_forward.5} parent=5 // pred_region
      // Predicated region
      $region25: #{inception_forward.5} parent=23 // pred_check
        %p128 = pneg %p29
      $region26: #{inception_forward.5} parent=23 // pred_check_branch
        %130 = sbr.rel (%p128) target = $region28
      $region27: #{inception_forward.5} parent=23 // pred_region
        %p131 = scmp.lt.s32.totalorder %s9, 1
        %s132 = scalar_select %p131, %s9, 1
        %s133 = smul.addr %s132, 3
        %s134 = smul.addr %s133, 4
        %s135 = scalar_lea.vmem %s0, %s134
      $region28: #{inception_forward.5} parent=23 // pred_fallthru
        _
    $region24: #{inception_forward.5} parent=5 // pred_fallthru
      _
    %p136 = scmp.le.s32.totalorder 1, %s9
    %p137 = scmp.lt.s32.totalorder %s9, 3
    %p138 = pnand %p136, %p137
    %p139 = pneg %p138
    // Predicated region
    $region29: #{inception_forward.5} parent=5 // pred_check
      _
    $region30: #{inception_forward.5} parent=5 // pred_check_branch
      %141 = sbr.rel (%p138) target = $region32
    $region31: #{inception_forward.5} parent=5 // pred_region
      %s142 = ssub.s32 %s9, 1
      %p143 = scmp.lt.s32.totalorder %s14, 1
      %s144 = scalar_select %p143, %s14, 1
      %s145 = smul.addr %s144, 3
      %s146 = smul.addr %s145, 4
      %s147 = scalar_lea.vmem %s0, %s146
      %p148 = pneg %p35
      %p149 = pneg %p32
      %p150 = pneg %p56
      %p151 = pneg %p53
      %p152 = pneg %p77
      %p153 = pneg %p74
      %p154 = pneg %p103
      %p155 = pneg %p100
      %p156 = scmp.lt.s32.totalorder %s14, 1
      %s157 = scalar_select %p156, %s14, 1
      %s158 = smul.addr %s157, 3
      %s159 = smul.addr %s158, 8
      %s160 = scalar_lea.vmem %s3, %s159
      %p161 = scmp.lt.s32.totalorder %s14, 1
      %s162 = scalar_select %p161, %s14, 1
      %s163 = smul.addr %s162, 3
      %s164 = smul.addr %s163, 4
      %s165 = scalar_lea.vmem %s0, %s164
      %p166 = scmp.lt.s32.totalorder %s14, 1
      %s167 = scalar_select %p166, %s14, 1
      %s168 = smul.addr %s167, 3
      %s169 = smul.addr %s168, 8
      %s170 = scalar_lea.vmem %s3, %s169
      %v172 = vld [vmem:[%s1] sm:$0xf]
      %v173 = vld [vmem:[%s165] sm:$0xff]
      %v174 = vld [vmem:[%s165 + $0x8] sm:$0xf]
      %s175 = scalar_lea.vmem %s1, 4
      %v176 = vld [vmem:[%s175] sm:$0xf]
      %v179 = vunpack.c.l.b16 %v173
      %v180 = vunpack.c.h.b16 %v173
      %v181 = vunpack.c.l.b16 %v174
      %v182 = vpack.c.b16 %v179, %v179
      %v183 = vpack.c.b16 %v180, %v180
      %v184 = vpack.c.b16 %v181, %v181
      %185 = vrot.lane.b32.xlu0 %v182, 127
      %v186 = vpop.permute.xlu0 %185
      %187 = vrot.lane.b32.xlu0 %v183, 127
      %v188 = vpop.permute.xlu0 %187
      %189 = vrot.lane.b32.xlu0 %v184, 127
      %v190 = vpop.permute.xlu0 %189
      %vm191 = vcmask 1039360
      %v192 = vsel %vm191, %v186, %v188
      %v193 = vsel %vm191, %v188, %v190
      %vm194 = vcmask 64512
      %v196 = vsel %vm194, %v176, 0
      %vm198 = vcmask 1043456
      %v200 = vsel %vm198, %v192, 0
      %v203 = vsel %vm198, %v193, 0
      %v206 = vsel %vm198, %v190, 0
      %208 = vmatprep.subr.bf16.mxu0 %v203
      %209 = vmatpush1.bf16.msra.mxu0 %v200
      %210 = vmatprep.subr.bf16.mxu0 0
      %211 = vmatpush1.bf16.msra.mxu0 0
      %212 = vmatprep.subr.bf16.mxu0 0
      %213 = vmatpush1.bf16.msra.mxu0 0
      %214 = vmatprep.subr.bf16.mxu0 0
      %215 = vmatpush1.bf16.msra.mxu0 0
      %216 = vmatprep.subr.bf16.mxu0 0
      %217 = vmatpush1.bf16.msra.mxu0 0
      %218 = vmatprep.subr.bf16.mxu0 0
      %219 = vmatpush1.bf16.msra.mxu0 0
      %220 = vmatprep.subr.bf16.mxu0 0
      %221 = vmatpush1.bf16.msra.mxu0 0
      %222 = vmatprep.subr.bf16.mxu0 0
      %223 = vmatpush1.bf16.msra.mxu0 0
      %224 = vmatprep.subr.bf16.mxu0 0
      %225 = vmatpush1.bf16.msra.mxu0 0
      %226 = vmatprep.subr.bf16.mxu0 0
      %227 = vmatpush1.bf16.msra.mxu0 0
      %228 = vmatprep.subr.bf16.mxu0 0
      %229 = vmatpush1.bf16.msra.mxu0 0
      %230 = vmatprep.subr.bf16.mxu0 0
      %231 = vmatpush1.bf16.msra.mxu0 0
      %232 = vmatprep.subr.bf16.mxu0 0
      %233 = vmatpush1.bf16.msra.mxu0 0
      %234 = vmatprep.subr.bf16.mxu0 0
      %235 = vmatpush1.bf16.msra.mxu0 0
      %236 = vmatprep.subr.bf16.mxu0 0
      %237 = vmatpush1.bf16.msra.mxu0 0
      %238 = vmatprep.subr.bf16.mxu0 0
      %239 = vmatpush1.bf16.msra.mxu0 0
      %240 = vmatprep.mubr.bf16.mxu0 0
      %241 = vmatmul.mubr.bf16.gmra.mrb[0].mxu0 %v196
      %v242 = vpop.f32.mrb[0].mxu0
      %v243 = vadd.f32 0.0, %v242
      %v244 = vpop.f32.mrb[0].mxu0
      %v245 = vadd.f32 0.0, %v244
      %v246 = vpop.f32.mrb[0].mxu0
      %v247 = vpop.f32.mrb[0].mxu0
      %248 = vdwg.mxu0
      %249 = vmatprep.subr.bf16.mxu0 0
      %250 = vmatpush1.bf16.msra.mxu0 %v206
      %251 = vmatprep.subr.bf16.mxu0 0
      %252 = vmatpush1.bf16.msra.mxu0 0
      %253 = vmatprep.subr.bf16.mxu0 0
      %254 = vmatpush1.bf16.msra.mxu0 0
      %255 = vmatprep.subr.bf16.mxu0 0
      %256 = vmatpush1.bf16.msra.mxu0 0
      %257 = vmatprep.subr.bf16.mxu0 0
      %258 = vmatpush1.bf16.msra.mxu0 0
      %259 = vmatprep.subr.bf16.mxu0 0
      %260 = vmatpush1.bf16.msra.mxu0 0
      %261 = vmatprep.subr.bf16.mxu0 0
      %262 = vmatpush1.bf16.msra.mxu0 0
      %263 = vmatprep.subr.bf16.mxu0 0
      %264 = vmatpush1.bf16.msra.mxu0 0
      %265 = vmatprep.subr.bf16.mxu0 0
      %266 = vmatpush1.bf16.msra.mxu0 0
      %267 = vmatprep.subr.bf16.mxu0 0
      %268 = vmatpush1.bf16.msra.mxu0 0
      %269 = vmatprep.subr.bf16.mxu0 0
      %270 = vmatpush1.bf16.msra.mxu0 0
      %271 = vmatprep.subr.bf16.mxu0 0
      %272 = vmatpush1.bf16.msra.mxu0 0
      %273 = vmatprep.subr.bf16.mxu0 0
      %274 = vmatpush1.bf16.msra.mxu0 0
      %275 = vmatprep.subr.bf16.mxu0 0
      %276 = vmatpush1.bf16.msra.mxu0 0
      %277 = vmatprep.subr.bf16.mxu0 0
      %278 = vmatpush1.bf16.msra.mxu0 0
      %279 = vmatprep.subr.bf16.mxu0 0
      %280 = vmatpush1.bf16.msra.mxu0 0
      %281 = vmatprep.mubr.bf16.mxu0 0
      %282 = vmatmul.mubr.bf16.gmra.mrb[0].mxu0 %v196
      %v283 = vpop.f32.mrb[0].mxu0
      %v284 = vadd.f32 0.0, %v283
      %v285 = vpop.f32.mrb[0].mxu0
      %v286 = vpop.f32.mrb[0].mxu0
      %v287 = vpop.f32.mrb[0].mxu0
      %288 = vdwg.mxu0
      %v290 = vsel %vm194, %v172, 0
      %v293 = vsel %vm198, %v182, 0
      %v296 = vsel %vm198, %v183, 0
      %v299 = vsel %vm198, %v184, 0
      %301 = vmatprep.subr.bf16.mxu0 %v296
      %302 = vmatpush1.bf16.msra.mxu0 %v293
      %303 = vmatprep.subr.bf16.mxu0 0
      %304 = vmatpush1.bf16.msra.mxu0 0
      %305 = vmatprep.subr.bf16.mxu0 0
      %306 = vmatpush1.bf16.msra.mxu0 0
      %307 = vmatprep.subr.bf16.mxu0 0
      %308 = vmatpush1.bf16.msra.mxu0 0
      %309 = vmatprep.subr.bf16.mxu0 0
      %310 = vmatpush1.bf16.msra.mxu0 0
      %311 = vmatprep.subr.bf16.mxu0 0
      %312 = vmatpush1.bf16.msra.mxu0 0
      %313 = vmatprep.subr.bf16.mxu0 0
      %314 = vmatpush1.bf16.msra.mxu0 0
      %315 = vmatprep.subr.bf16.mxu0 0
      %316 = vmatpush1.bf16.msra.mxu0 0
      %317 = vmatprep.subr.bf16.mxu0 0
      %318 = vmatpush1.bf16.msra.mxu0 0
      %319 = vmatprep.subr.bf16.mxu0 0
      %320 = vmatpush1.bf16.msra.mxu0 0
      %321 = vmatprep.subr.bf16.mxu0 0
      %322 = vmatpush1.bf16.msra.mxu0 0
      %323 = vmatprep.subr.bf16.mxu0 0
      %324 = vmatpush1.bf16.msra.mxu0 0
      %325 = vmatprep.subr.bf16.mxu0 0
      %326 = vmatpush1.bf16.msra.mxu0 0
      %327 = vmatprep.subr.bf16.mxu0 0
      %328 = vmatpush1.bf16.msra.mxu0 0
      %329 = vmatprep.subr.bf16.mxu0 0
      %330 = vmatpush1.bf16.msra.mxu0 0
      %331 = vmatprep.subr.bf16.mxu0 0
      %332 = vmatpush1.bf16.msra.mxu0 0
      %333 = vmatprep.mubr.bf16.mxu0 0
      %334 = vmatmul.mubr.bf16.gmra.mrb[0].mxu0 %v290
      %v335 = vpop.f32.mrb[0].mxu0
      %v336 = vadd.f32 %v243, %v335
      %v337 = vpop.f32.mrb[0].mxu0
      %v338 = vadd.f32 %v245, %v337
      %v339 = vpop.f32.mrb[0].mxu0
      %v340 = vpop.f32.mrb[0].mxu0
      %341 = vdwg.mxu0
      %342 = vmatprep.subr.bf16.mxu0 0
      %343 = vmatpush1.bf16.msra.mxu0 %v299
      %344 = vmatprep.subr.bf16.mxu0 0
      %345 = vmatpush1.bf16.msra.mxu0 0
      %346 = vmatprep.subr.bf16.mxu0 0
      %347 = vmatpush1.bf16.msra.mxu0 0
      %348 = vmatprep.subr.bf16.mxu0 0
      %349 = vmatpush1.bf16.msra.mxu0 0
      %350 = vmatprep.subr.bf16.mxu0 0
      %351 = vmatpush1.bf16.msra.mxu0 0
      %352 = vmatprep.subr.bf16.mxu0 0
      %353 = vmatpush1.bf16.msra.mxu0 0
      %354 = vmatprep.subr.bf16.mxu0 0
      %355 = vmatpush1.bf16.msra.mxu0 0
      %356 = vmatprep.subr.bf16.mxu0 0
      %357 = vmatpush1.bf16.msra.mxu0 0
      %358 = vmatprep.subr.bf16.mxu0 0
      %359 = vmatpush1.bf16.msra.mxu0 0
      %360 = vmatprep.subr.bf16.mxu0 0
      %361 = vmatpush1.bf16.msra.mxu0 0
      %362 = vmatprep.subr.bf16.mxu0 0
      %363 = vmatpush1.bf16.msra.mxu0 0
      %364 = vmatprep.subr.bf16.mxu0 0
      %365 = vmatpush1.bf16.msra.mxu0 0
      %366 = vmatprep.subr.bf16.mxu0 0
      %367 = vmatpush1.bf16.msra.mxu0 0
      %368 = vmatprep.subr.bf16.mxu0 0
      %369 = vmatpush1.bf16.msra.mxu0 0
      %370 = vmatprep.subr.bf16.mxu0 0
      %371 = vmatpush1.bf16.msra.mxu0 0
      %372 = vmatprep.subr.bf16.mxu0 0
      %373 = vmatpush1.bf16.msra.mxu0 0
      %374 = vmatprep.mubr.bf16.mxu0 0
      %375 = vmatmul.mubr.bf16.gmra.mrb[0].mxu0 %v290
      %v376 = vpop.f32.mrb[0].mxu0
      %v377 = vadd.f32 %v284, %v376
      %v378 = vpop.f32.mrb[0].mxu0
      %v379 = vpop.f32.mrb[0].mxu0
      %v380 = vpop.f32.mrb[0].mxu0
      %381 = vdwg.mxu0
      %s382 = scalar_lea.vmem %s1, 8
      %v383 = vld [vmem:[%s382] sm:$0xf]
      %384 = vrot.lane.b32.xlu0 %v182, 126
      %v385 = vpop.permute.xlu0 %384
      %386 = vrot.lane.b32.xlu0 %v183, 126
      %v387 = vpop.permute.xlu0 %386
      %388 = vrot.lane.b32.xlu0 %v184, 126
      %v389 = vpop.permute.xlu0 %388
      %vm390 = vcmask 1031168
      %v391 = vsel %vm390, %v385, %v387
      %v392 = vsel %vm390, %v387, %v389
      %v394 = vsel %vm194, %v383, 0
      %v397 = vsel %vm198, %v391, 0
      %v400 = vsel %vm198, %v392, 0
      %v403 = vsel %vm198, %v389, 0
      %405 = vmatprep.subr.bf16.mxu0 %v400
      %406 = vmatpush1.bf16.msra.mxu0 %v397
      %407 = vmatprep.subr.bf16.mxu0 0
      %408 = vmatpush1.bf16.msra.mxu0 0
      %409 = vmatprep.subr.bf16.mxu0 0
      %410 = vmatpush1.bf16.msra.mxu0 0
      %411 = vmatprep.subr.bf16.mxu0 0
      %412 = vmatpush1.bf16.msra.mxu0 0
      %413 = vmatprep.subr.bf16.mxu0 0
      %414 = vmatpush1.bf16.msra.mxu0 0
      %415 = vmatprep.subr.bf16.mxu0 0
      %416 = vmatpush1.bf16.msra.mxu0 0
      %417 = vmatprep.subr.bf16.mxu0 0
      %418 = vmatpush1.bf16.msra.mxu0 0
      %419 = vmatprep.subr.bf16.mxu0 0
      %420 = vmatpush1.bf16.msra.mxu0 0
      %421 = vmatprep.subr.bf16.mxu0 0
      %422 = vmatpush1.bf16.msra.mxu0 0
      %423 = vmatprep.subr.bf16.mxu0 0
      %424 = vmatpush1.bf16.msra.mxu0 0
      %425 = vmatprep.subr.bf16.mxu0 0
      %426 = vmatpush1.bf16.msra.mxu0 0
      %427 = vmatprep.subr.bf16.mxu0 0
      %428 = vmatpush1.bf16.msra.mxu0 0
      %429 = vmatprep.subr.bf16.mxu0 0
      %430 = vmatpush1.bf16.msra.mxu0 0
      %431 = vmatprep.subr.bf16.mxu0 0
      %432 = vmatpush1.bf16.msra.mxu0 0
      %433 = vmatprep.subr.bf16.mxu0 0
      %434 = vmatpush1.bf16.msra.mxu0 0
      %435 = vmatprep.subr.bf16.mxu0 0
      %436 = vmatpush1.bf16.msra.mxu0 0
      %437 = vmatprep.mubr.bf16.mxu0 0
      %438 = vmatmul.mubr.bf16.gmra.mrb[0].mxu0 %v394
      %v439 = vpop.f32.mrb[0].mxu0
      %v440 = vadd.f32 0.0, %v439
      %v441 = vpop.f32.mrb[0].mxu0
      %v442 = vadd.f32 0.0, %v441
      %v443 = vpop.f32.mrb[0].mxu0
      %v444 = vpop.f32.mrb[0].mxu0
      %445 = vdwg.mxu0
      %446 = vmatprep.subr.bf16.mxu0 0
      %447 = vmatpush1.bf16.msra.mxu0 %v403
      %448 = vmatprep.subr.bf16.mxu0 0
      %449 = vmatpush1.bf16.msra.mxu0 0
      %450 = vmatprep.subr.bf16.mxu0 0
      %451 = vmatpush1.bf16.msra.mxu0 0
      %452 = vmatprep.subr.bf16.mxu0 0
      %453 = vmatpush1.bf16.msra.mxu0 0
      %454 = vmatprep.subr.bf16.mxu0 0
      %455 = vmatpush1.bf16.msra.mxu0 0
      %456 = vmatprep.subr.bf16.mxu0 0
      %457 = vmatpush1.bf16.msra.mxu0 0
      %458 = vmatprep.subr.bf16.mxu0 0
      %459 = vmatpush1.bf16.msra.mxu0 0
      %460 = vmatprep.subr.bf16.mxu0 0
      %461 = vmatpush1.bf16.msra.mxu0 0
      %462 = vmatprep.subr.bf16.mxu0 0
      %463 = vmatpush1.bf16.msra.mxu0 0
      %464 = vmatprep.subr.bf16.mxu0 0
      %465 = vmatpush1.bf16.msra.mxu0 0
      %466 = vmatprep.subr.bf16.mxu0 0
      %467 = vmatpush1.bf16.msra.mxu0 0
      %468 = vmatprep.subr.bf16.mxu0 0
      %469 = vmatpush1.bf16.msra.mxu0 0
      %470 = vmatprep.subr.bf16.mxu0 0
      %471 = vmatpush1.bf16.msra.mxu0 0
      %472 = vmatprep.subr.bf16.mxu0 0
      %473 = vmatpush1.bf16.msra.mxu0 0
      %474 = vmatprep.subr.bf16.mxu0 0
      %475 = vmatpush1.bf16.msra.mxu0 0
      %476 = vmatprep.subr.bf16.mxu0 0
      %477 = vmatpush1.bf16.msra.mxu0 0
      %478 = vmatprep.mubr.bf16.mxu0 0
      %479 = vmatmul.mubr.bf16.gmra.mrb[0].mxu0 %v394
      %v480 = vpop.f32.mrb[0].mxu0
      %v481 = vadd.f32 0.0, %v480
      %v482 = vpop.f32.mrb[0].mxu0
      %v483 = vpop.f32.mrb[0].mxu0
      %v484 = vpop.f32.mrb[0].mxu0
      %485 = vdwg.mxu0
      %v486 = vadd.f32 %v336, %v440
      %v487 = vadd.f32 %v338, %v442
      %v488 = vadd.f32 %v377, %v481
      %v489 = vld [vmem:[%s2] sm:$0xff]
      %491 = vset.pattern.permute.xlu0 0
      %492 = vperm.xlu0 %491, %v489
      %v493 = vpop.permute.xlu0 %492
      %v495 = vadd.f32 %v486, %v493
      %v496 = vadd.f32 %v487, %v493
      %v497 = vadd.f32 %v488, %v493
      %v498 = vmax.f32 %v495, 0.0
      %v499 = vmax.f32 %v496, 0.0
      %v500 = vmax.f32 %v497, 0.0
      %501 = vst [vmem:[%s170] sm:$0xff] %v498
      %502 = vst [vmem:[%s170 + $0x8] sm:$0xff] %v499
      %vm503 = vcmask 261120
      %504 = vst.msk [vmem:[%s170 + $0x10] sm:$0xff] %vm503, %v500
      %p505 = scmp.lt.s32.totalorder %s14, 1
      %s506 = scalar_select %p505, %s14, 1
      %s507 = smul.addr %s506, 3
      %s508 = smul.addr %s507, 8
      %s509 = scalar_lea.vmem %s3, %s508
      // Predicated region
      $region33: #{inception_forward.5} parent=31 // pred_check
        %p510 = pneg %p100
      $region34: #{inception_forward.5} parent=31 // pred_check_branch
        %512 = sbr.rel (%p510) target = $region36
      $region35: #{inception_forward.5} parent=31 // pred_region
        _
      $region36: #{inception_forward.5} parent=31 // pred_fallthru
        _
    $region32: #{inception_forward.5} parent=5 // pred_fallthru
      _
    %p513 = scmp.le.s32.totalorder 2, %s9
    // Predicated region
    $region37: #{inception_forward.5} parent=5 // pred_check
      %p514 = pneg %p513
    $region38: #{inception_forward.5} parent=5 // pred_check_branch
      %516 = sbr.rel (%p514) target = $region40
    $region39: #{inception_forward.5} parent=5 // pred_region
      %s517 = ssub.s32 %s9, 2
      // Predicated region
      $region41: #{inception_forward.5} parent=39 // pred_check
        %p518 = pneg %p106
      $region42: #{inception_forward.5} parent=39 // pred_check_branch
        %520 = sbr.rel (%p518) target = $region44
      $region43: #{inception_forward.5} parent=39 // pred_region
        %p521 = scmp.lt.s32.totalorder %s15, 1
        %s522 = scalar_select %p521, %s15, 1
        %s523 = smul.addr %s522, 3
        %s524 = smul.addr %s523, 8
        %s525 = scalar_lea.vmem %s3, %s524
      $region44: #{inception_forward.5} parent=39 // pred_fallthru
        _
    $region40: #{inception_forward.5} parent=5 // pred_fallthru
      _
  $region6: #{inception_forward.5} parent=0 // loop_footer
    %s13 = sadd.s32 1, %s9
  $region7: #{inception_forward.5} parent=0 // loop_footer_branch
    %8 = sbr.rel target = $region3
  $region8: #{inception_forward.5} parent=0 // loop_exit
    _

</llo_original>
